<compile_context>
chip_gen: v5e
topology: v5e:2x2
jax: 0.10.0
libtpu: 0.0.40
codegen_flags: <defaults>
</compile_context>

<pallas_src>
import functools

import jax
import jax.numpy as jnp
import numpy as np
from jax import lax
from jax.experimental import pallas as pl
from jax.experimental.pallas import tpu as pltpu

BN_EPS = 1e-5


# ----------------------------------------------------------------------------
# Static helpers (shape-only decisions; safe under jit).
# ----------------------------------------------------------------------------
def _round_up(n, m):
    return ((n + m - 1) // m) * m


def _vmem_budget_and_limit():
    """Generation-aware VMEM sizing (128 MiB on v5e/v6e, 64 MiB on v7x)."""
    cap = 64 * 2**20
    try:
        cap = int(pltpu.get_tpu_info().vmem_capacity_bytes)
    except Exception:
        pass
    limit = max(32 * 2**20, min(int(cap * 0.75), cap - 2 * 2**20))
    budget = max(16 * 2**20, int(cap * 0.4))
    return budget, limit


def _conv_vmem_bytes(th, l_in, l_out):
    """Conservative per-grid-step estimate: double-buffered ins/outs, resident
    Toeplitz weight, f32 accumulator and bf16 halo temporaries."""
    lin = _round_up(l_in, 128)
    lout = _round_up(l_out, 128)
    in_b = th * lin * 2 + 2 * 16 * lin * 2 + 2 * lin * 4          # mid + halos + scale/shift
    w_b = 3 * lin * lout * 2 + lout * 4                           # Toeplitz + bias
    out_b = th * lout * 2 + 8 * lout * 4                          # y (bf16) + stats
    live_b = th * lout * 4 + (th + 2) * lin * 2 + th * lin * 4    # acc + halo + f32 mid
    return 2 * (in_b + w_b + out_b) + live_b


def _pick_h_tile(N, H, l_in, l_out, budget):
    """Largest 16-row-aligned divisor of H that fits VMEM; prefer >=8 grid steps."""
    if H % 16 != 0:
        # TODO(synk): masked tail tiles for heights that are not multiples of 16.
        return H
    cands = [th for th in range(16, H + 1, 16) if H % th == 0]
    fits = [th for th in cands if _conv_vmem_bytes(th, l_in, l_out) <= budget] or [16]
    pref = [th for th in fits if N * (H // th) >= 8]     # keep both v7x TCs busy
    return max(pref) if pref else max(fits)


def _pick_row_tile(R, l, budget):
    if R % 16 != 0:
        return R
    lane = _round_up(l, 128)
    max_rows = max(16, budget // (lane * 6 * 2))
    cands = [tr for tr in range(16, R + 1, 16) if R % tr == 0 and tr <= max_rows]
    return max(cands) if cands else 16


# ----------------------------------------------------------------------------
# Parameter folding (tiny one-off XLA work).
# ----------------------------------------------------------------------------
def _toeplitz_weight(w_hwio, W):
    """(3,3,Cin,Cout) HWIO kernel -> 3 block-Toeplitz matrices
    ((W+2)*Cin, (W+2)*Cout), so one W-padded folded row is one MXU matmul."""
    kh, kw, cin, cout = w_hwio.shape
    sel = np.zeros((kw, W + 2, W), np.float32)
    for dx in range(kw):
        sel[dx, np.arange(W) + dx, np.arange(W)] = 1.0
    t = jnp.einsum("xpj,yxio->ypijo", jnp.asarray(sel), w_hwio.astype(jnp.float32))
    t = jnp.pad(t, ((0, 0), (0, 0), (0, 0), (1, 1), (0, 0)))   # zero border out-columns
    return t.reshape(kh, (W + 2) * cin, (W + 2) * cout).astype(jnp.bfloat16)


def _fold_lanes(vec, W, zero_border):
    """Per-channel vector (C,) -> folded per-lane row (1, (W+2)*C)."""
    C = vec.shape[0]
    v = jnp.tile(vec.astype(jnp.float32), (W + 2,)).reshape(W + 2, C)
    if zero_border:
        v = v.at[0].set(0.0).at[W + 1].set(0.0)
    return v.reshape(1, (W + 2) * C)


# ----------------------------------------------------------------------------
# Kernel 1: fused [optional previous-block BN+ReLU] -> 3x3 conv (3 MXU matmuls
# against block-Toeplitz weights, bf16 operands / f32 accumulation) -> per-tile
# per-lane sum / bias-centred sum-of-squares.
# ----------------------------------------------------------------------------
def _conv_kernel(top_ref, mid_ref, bot_ref, w_ref, b_ref, scale_ref, shift_ref,
                 y_ref, stats_ref, *, TH, HB, n_htiles, apply_act):
    # top_ref/bot_ref: (HB, L_in) bf16   -- halo row lives at [HB-1] / [0]
    # mid_ref:         (TH, L_in) bf16   -- this tile's rows (folded layout)
    # w_ref:           (3, L_in, L_out) bf16 block-Toeplitz weights (resident)
    # b_ref:           (1, L_out) f32    -- folded conv bias (zero at W borders)
    # scale/shift_ref: (1, L_in)  f32    -- previous-block BN (if apply_act)
    # y_ref:           (TH, L_out) bf16  -- raw conv output (pre-BN)
    # stats_ref:       (8, L_out) f32    -- rows 0/1 = sum(y), sum((y-b)^2)
    t = pl.program_id(1)
    l_out = w_ref.shape[-1]

    def prep(v):
        v = v.astype(jnp.float32)
        if apply_act:
            v = jnp.maximum(v * scale_ref[...] + shift_ref[...], 0.0)
        return v

    mid = prep(mid_ref[...])
    top = prep(top_ref[HB - 1:HB, :]) * (t > 0).astype(jnp.float32)
    bot = prep(bot_ref[0:1, :]) * (t < n_htiles - 1).astype(jnp.float32)

    halo = jnp.concatenate([top, mid, bot], axis=0).astype(jnp.bfloat16)  # (TH+2, L_in)

    acc = jnp.zeros((TH, l_out), jnp.float32)
    for dy in range(3):                                    # static unroll: 3 MXU matmuls
        acc += jnp.dot(halo[dy:dy + TH, :], w_ref[dy],
                       preferred_element_type=jnp.float32)
    acc += b_ref[...]

    y_ref[...] = acc.astype(y_ref.dtype)

    centered = acc - b_ref[...]
    stats_ref[...] = jnp.concatenate(
        [jnp.sum(acc, axis=0, keepdims=True),
         jnp.sum(centered * centered, axis=0, keepdims=True),
         jnp.zeros((6, l_out), jnp.float32)], axis=0)


def _conv_block(act_in, w_t, bias_f, scale_f, shift_f, *, TH, apply_act, vmem_limit):
    """One fused conv + stats pass over folded (N, H, (W+2)*C) activations."""
    N, H, L_in = act_in.shape
    L_out = w_t.shape[-1]
    nH = H // TH

    if nH > 1:                       # H and TH are multiples of 16 here
        HB = 16
        tb = TH // 16
        last = H // 16 - 1
        top_map = lambda n, t: (n, jnp.maximum(t * tb - 1, 0), 0)
        bot_map = lambda n, t: (n, jnp.minimum((t + 1) * tb, last), 0)
    else:                            # single tile: halos are zeroed in-kernel
        HB = 16 if H >= 16 else H
        top_map = lambda n, t: (n, 0, 0)
        bot_map = lambda n, t: (n, 0, 0)

    kernel = functools.partial(_conv_kernel, TH=TH, HB=HB, n_htiles=nH,
                               apply_act=apply_act)
    return pl.pallas_call(
        kernel,
        out_shape=(jax.ShapeDtypeStruct((N, H, L_out), jnp.bfloat16),
                   jax.ShapeDtypeStruct((N, nH, 8, L_out), jnp.float32)),
        grid=(N, nH),
        in_specs=[
            pl.BlockSpec((None, HB, L_in), top_map),
            pl.BlockSpec((None, TH, L_in), lambda n, t: (n, t, 0)),
            pl.BlockSpec((None, HB, L_in), bot_map),
            pl.BlockSpec((3, L_in, L_out), lambda n, t: (0, 0, 0)),   # resident
            pl.BlockSpec((1, L_out), lambda n, t: (0, 0)),
            pl.BlockSpec((1, L_in), lambda n, t: (0, 0)),
            pl.BlockSpec((1, L_in), lambda n, t: (0, 0)),
        ],
        out_specs=(
            pl.BlockSpec((None, TH, L_out), lambda n, t: (n, t, 0)),
            pl.BlockSpec((None, None, 8, L_out), lambda n, t: (n, t, 0, 0)),
        ),
        compiler_params=pltpu.CompilerParams(
            dimension_semantics=("parallel", "parallel"),
            vmem_limit_bytes=vmem_limit),
    )(act_in, act_in, act_in, w_t, bias_f, scale_f, shift_f)


# ----------------------------------------------------------------------------
# Kernel 2: row-tiled, lane-dense  y * scale + shift -> ReLU  (final block).
# ----------------------------------------------------------------------------
def _affine_relu_kernel(y_ref, scale_ref, shift_ref, o_ref):
    y = y_ref[...].astype(jnp.float32)
    o_ref[...] = jnp.maximum(y * scale_ref[...] + shift_ref[...], 0.0)


def _affine_relu(y_flat, scale_f, shift_f, tr, vmem_limit):
    R, L = y_flat.shape
    return pl.pallas_call(
        _affine_relu_kernel,
        out_shape=jax.ShapeDtypeStruct((R, L), jnp.float32),
        grid=(R // tr,),
        in_specs=[pl.BlockSpec((tr, L), lambda i: (i, 0)),
                  pl.BlockSpec((1, L), lambda i: (0, 0)),
                  pl.BlockSpec((1, L), lambda i: (0, 0))],
        out_specs=pl.BlockSpec((tr, L), lambda i: (i, 0)),
        compiler_params=pltpu.CompilerParams(
            dimension_semantics=("parallel",),
            vmem_limit_bytes=vmem_limit),
    )(y_flat, scale_f, shift_f)


# ----------------------------------------------------------------------------
# Plain-JAX glue.
# ----------------------------------------------------------------------------
def _bn_scale_shift(stats, bias, gamma, beta, W, cout, count):
    """Global batch-norm scale/shift from per-tile per-lane sums."""
    tot = jnp.sum(stats, axis=(0, 1))                        # (8, (W+2)*cout)
    s = tot[0].reshape(W + 2, cout)[1:W + 1].sum(axis=0)     # sum(y)        per channel
    ss = tot[1].reshape(W + 2, cout)[1:W + 1].sum(axis=0)    # sum((y-b)^2)  per channel
    mean = s / count
    var = jnp.maximum(ss / count - (mean - bias) ** 2, 0.0)  # biased variance
    scale = gamma * lax.rsqrt(var + BN_EPS)
    shift = beta - mean * scale
    return scale, shift


def convolution_forward(x_nchw, params):
    """Equivalent of Convolution.forward (NCHW in, NCHW out)."""
    N, cin, H, W = x_nchw.shape
    cout = params["w1"].shape[-1]
    L_in = (W + 2) * cin
    L_mid = (W + 2) * cout
    count = float(N * H * W)

    budget, vmem_limit = _vmem_budget_and_limit()

    # TODO(synk): for large W*C switch to a channel-blocked im2col path -- the
    # block-Toeplitz weight scales as W^2 * Cin * Cout.
    t1 = _toeplitz_weight(params["w1"], W)
    t2 = _toeplitz_weight(params["w2"], W)
    b1_f = _fold_lanes(params["b1"], W, zero_border=True)
    b2_f = _fold_lanes(params["b2"], W, zero_border=True)

    # NCHW -> folded, W-padded, bf16 activations (N, H, (W+2)*Cin).  No channel
    # padding in HBM; lanes = (W+2)*C keeps stores lane-dense.
    x = jnp.transpose(x_nchw, (0, 2, 3, 1)).astype(jnp.float32)
    x = jnp.pad(x, ((0, 0), (0, 0), (1, 1), (0, 0)))
    x = x.reshape(N, H, L_in).astype(jnp.bfloat16)

    # ---- block 1: conv1 + BN1 statistics -----------------------------------
    th1 = _pick_h_tile(N, H, L_in, L_mid, budget)
    y1, stats1 = _conv_block(
        x, t1, b1_f,
        jnp.ones((1, L_in), jnp.float32), jnp.zeros((1, L_in), jnp.float32),
        TH=th1, apply_act=False, vmem_limit=vmem_limit)
    scale1, shift1 = _bn_scale_shift(stats1, params["b1"], params["g1"],
                                     params["beta1"], W, cout, count)

    # ---- block 2: BN1+ReLU fused into conv2's input path + BN2 statistics --
    th2 = _pick_h_tile(N, H, L_mid, L_mid, budget)
    y2, stats2 = _conv_block(
        y1, t2, b2_f,
        _fold_lanes(scale1, W, zero_border=False),
        _fold_lanes(shift1, W, zero_border=True),
        TH=th2, apply_act=True, vmem_limit=vmem_limit)
    scale2, shift2 = _bn_scale_shift(stats2, params["b2"], params["g2"],
                                     params["beta2"], W, cout, count)

    # ---- final BN2 + ReLU (row-tiled, lane-dense) ---------------------------
    R = N * H
    tr = _pick_row_tile(R, L_mid, budget)
    out_f = _affine_relu(y2.reshape(R, L_mid),
                         _fold_lanes(scale2, W, zero_border=False),
                         _fold_lanes(shift2, W, zero_border=True),
                         tr, vmem_limit)
    out = out_f.reshape(N, H, W + 2, cout)[:, :, 1:W + 1, :]
    return jnp.transpose(out, (0, 3, 1, 2))                  # NCHW


# ----------------------------------------------------------------------------
# Pure-JAX reference with the same rounding points as the kernel path
# (bf16 MXU operands, bf16 HBM intermediates, f32 math & statistics).
# ----------------------------------------------------------------------------
def reference_forward(x_nchw, params):
    x = jnp.transpose(x_nchw, (0, 2, 3, 1)).astype(jnp.float32)

    def block(x_in, w_hwio, b, g, beta):
        xb = x_in.astype(jnp.bfloat16).astype(jnp.float32)
        wb = w_hwio.astype(jnp.bfloat16).astype(jnp.float32)
        y = lax.conv_general_dilated(
            xb, wb, (1, 1), "SAME",
            dimension_numbers=("NHWC", "HWIO", "NHWC"),
            precision=lax.Precision.HIGHEST) + b.reshape(1, 1, 1, -1)
        mean = jnp.mean(y, axis=(0, 1, 2))
        var = jnp.mean((y - mean) ** 2, axis=(0, 1, 2))
        scale = g * lax.rsqrt(var + BN_EPS)
        shift = beta - mean * scale
        yq = y.astype(jnp.bfloat16).astype(jnp.float32)   # mirror bf16 HBM store
        return jnp.maximum(yq * scale + shift, 0.0)

    y = block(x, params["w1"], params["b1"], params["g1"], params["beta1"])
    y = block(y, params["w2"], params["b2"], params["g2"], params["beta2"])
    return jnp.transpose(y, (0, 3, 1, 2))


# ----------------------------------------------------------------------------
# Deterministic parameter init (shapes from Convolution.__init__).
# ----------------------------------------------------------------------------
def init_params(key, in_ch, out_ch):
    ks = jax.random.split(key, 8)
    return {
        "w1": jax.random.normal(ks[0], (3, 3, in_ch, out_ch), jnp.float32) * 0.1,
        "b1": jax.random.normal(ks[1], (out_ch,), jnp.float32) * 0.1,
        "g1": 1.0 + 0.1 * jax.random.normal(ks[2], (out_ch,), jnp.float32),
        "beta1": 0.1 * jax.random.normal(ks[3], (out_ch,), jnp.float32),
        "w2": jax.random.normal(ks[4], (3, 3, out_ch, out_ch), jnp.float32) * 0.1,
        "b2": jax.random.normal(ks[5], (out_ch,), jnp.float32) * 0.1,
        "g2": 1.0 + 0.1 * jax.random.normal(ks[6], (out_ch,), jnp.float32),
        "beta2": 0.1 * jax.random.normal(ks[7], (out_ch,), jnp.float32),
    }


if __name__ == "__main__":
    key = jax.random.PRNGKey(0)
    k_x, k_p = jax.random.split(key)

    N, IN_CH, OUT_CH, H, W = 2, 4, 8, 16, 16
    x = jax.random.normal(k_x, (N, IN_CH, H, W), jnp.float32)   # NCHW, like PyTorch
    params = init_params(k_p, IN_CH, OUT_CH)

    fwd = jax.jit(convolution_forward)
    out = jax.block_until_ready(fwd(x, params))
    assert out.shape == (N, OUT_CH, H, W), out.shape

    ref = jax.block_until_ready(reference_forward(x, params))
    np.testing.assert_allclose(np.asarray(out), np.asarray(ref), atol=2e-3, rtol=2e-2)

    print("KERNEL_OK")
</pallas_src>

<mosaic_0001>
module attributes {stable_mosaic.version = 11 : i64} {
  func.func @_conv_kernel(%arg0: i32, %arg1: i32, %arg2: memref<1x16x72xbf16, #tpu.memory_space<vmem>>, %arg3: memref<1x16x72xbf16, #tpu.memory_space<vmem>>, %arg4: memref<1x16x72xbf16, #tpu.memory_space<vmem>>, %arg5: memref<3x72x144xbf16, #tpu.memory_space<vmem>>, %arg6: memref<1x144xf32, #tpu.memory_space<vmem>>, %arg7: memref<1x72xf32, #tpu.memory_space<vmem>>, %arg8: memref<1x72xf32, #tpu.memory_space<vmem>>, %arg9: memref<1x16x144xbf16, #tpu.memory_space<vmem>>, %arg10: memref<1x1x8x144xf32, #tpu.memory_space<vmem>>) attributes {dimension_semantics = [#tpu.dimension_semantics<parallel>, #tpu.dimension_semantics<parallel>], iteration_bounds = array<i64: 2, 1>, scalar_prefetch = 0 : i64, scratch_operands = 0 : i64, tpu.core_type = #tpu.core_type<tc>, window_params = [{transform_indices = @transform_0, window_bounds = array<i64: 1, 16, 72>}, {transform_indices = @transform_1, window_bounds = array<i64: 1, 16, 72>}, {transform_indices = @transform_2, window_bounds = array<i64: 1, 16, 72>}, {pipeline_mode = #tpu.pipeline_mode<synchronous>, transform_indices = @transform_3, window_bounds = array<i64: 3, 72, 144>}, {pipeline_mode = #tpu.pipeline_mode<synchronous>, transform_indices = @transform_4, window_bounds = array<i64: 1, 144>}, {pipeline_mode = #tpu.pipeline_mode<synchronous>, transform_indices = @transform_5, window_bounds = array<i64: 1, 72>}, {pipeline_mode = #tpu.pipeline_mode<synchronous>, transform_indices = @transform_6, window_bounds = array<i64: 1, 72>}, {transform_indices = @transform_7, window_bounds = array<i64: 1, 16, 144>}, {transform_indices = @transform_8, window_bounds = array<i64: 1, 1, 8, 144>}]} {
    %c0 = arith.constant 0 : index
    %c0_0 = arith.constant 0 : index
    %c0_1 = arith.constant 0 : index
    %0 = vector.load %arg3[%c0, %c0_0, %c0_1] : memref<1x16x72xbf16, #tpu.memory_space<vmem>>, vector<1x16x72xbf16>
    %1 = vector.shape_cast %0 : vector<1x16x72xbf16> to vector<16x72xbf16>
    %2 = arith.extf %1 : vector<16x72xbf16> to vector<16x72xf32>
    %c0_2 = arith.constant 0 : index
    %c15 = arith.constant 15 : index
    %c0_3 = arith.constant 0 : index
    %3 = vector.load %arg2[%c0_2, %c15, %c0_3] : memref<1x16x72xbf16, #tpu.memory_space<vmem>>, vector<1x1x72xbf16>
    %4 = vector.shape_cast %3 : vector<1x1x72xbf16> to vector<1x72xbf16>
    %5 = arith.extf %4 : vector<1x72xbf16> to vector<1x72xf32>
    %c0_i32 = arith.constant 0 : i32
    %6 = arith.cmpi sgt, %arg1, %c0_i32 : i32
    %7 = arith.extui %6 : i1 to i32
    %8 = arith.sitofp %7 : i32 to f32
    %9 = vector.broadcast %8 : f32 to vector<1x72xf32>
    %10 = arith.mulf %5, %9 : vector<1x72xf32>
    %c0_4 = arith.constant 0 : index
    %c0_5 = arith.constant 0 : index
    %c0_6 = arith.constant 0 : index
    %11 = vector.load %arg4[%c0_4, %c0_5, %c0_6] : memref<1x16x72xbf16, #tpu.memory_space<vmem>>, vector<1x1x72xbf16>
    %12 = vector.shape_cast %11 : vector<1x1x72xbf16> to vector<1x72xbf16>
    %13 = arith.extf %12 : vector<1x72xbf16> to vector<1x72xf32>
    %c0_i32_7 = arith.constant 0 : i32
    %14 = arith.cmpi slt, %arg1, %c0_i32_7 : i32
    %15 = arith.extui %14 : i1 to i32
    %16 = arith.sitofp %15 : i32 to f32
    %17 = vector.broadcast %16 : f32 to vector<1x72xf32>
    %18 = arith.mulf %13, %17 : vector<1x72xf32>
    %19 = tpu.concatenate %10, %2, %18 in 0 : vector<1x72xf32>, vector<16x72xf32>, vector<1x72xf32> -> vector<18x72xf32>
    %20 = arith.truncf %19 : vector<18x72xf32> to vector<18x72xbf16>
    %cst = arith.constant 0.000000e+00 : f32
    %21 = vector.broadcast %cst : f32 to vector<16x144xf32>
    %22 = vector.extract_strided_slice %20 {offsets = [0, 0], sizes = [16, 72], strides = [1, 1]} : vector<18x72xbf16> to vector<16x72xbf16>
    %c0_8 = arith.constant 0 : index
    %c0_9 = arith.constant 0 : index
    %c0_10 = arith.constant 0 : index
    %23 = vector.load %arg5[%c0_8, %c0_9, %c0_10] : memref<3x72x144xbf16, #tpu.memory_space<vmem>>, vector<1x72x144xbf16>
    %24 = vector.shape_cast %23 : vector<1x72x144xbf16> to vector<72x144xbf16>
    %cst_11 = arith.constant dense<0.000000e+00> : vector<16x144xf32>
    %25 = tpu.matmul %22, %24, %cst_11 {dimension_numbers = #tpu.dot_dimension_numbers<[1], [0], [0], [1], [0, 0, 1, 1], [], []>} : vector<16x72xbf16>, vector<72x144xbf16>, vector<16x144xf32> -> vector<16x144xf32>
    %26 = arith.addf %21, %25 : vector<16x144xf32>
    %27 = vector.extract_strided_slice %20 {offsets = [1, 0], sizes = [16, 72], strides = [1, 1]} : vector<18x72xbf16> to vector<16x72xbf16>
    %c1 = arith.constant 1 : index
    %c0_12 = arith.constant 0 : index
    %c0_13 = arith.constant 0 : index
    %28 = vector.load %arg5[%c1, %c0_12, %c0_13] : memref<3x72x144xbf16, #tpu.memory_space<vmem>>, vector<1x72x144xbf16>
    %29 = vector.shape_cast %28 : vector<1x72x144xbf16> to vector<72x144xbf16>
    %cst_14 = arith.constant dense<0.000000e+00> : vector<16x144xf32>
    %30 = tpu.matmul %27, %29, %cst_14 {dimension_numbers = #tpu.dot_dimension_numbers<[1], [0], [0], [1], [0, 0, 1, 1], [], []>} : vector<16x72xbf16>, vector<72x144xbf16>, vector<16x144xf32> -> vector<16x144xf32>
    %31 = arith.addf %26, %30 : vector<16x144xf32>
    %32 = vector.extract_strided_slice %20 {offsets = [2, 0], sizes = [16, 72], strides = [1, 1]} : vector<18x72xbf16> to vector<16x72xbf16>
    %c2 = arith.constant 2 : index
    %c0_15 = arith.constant 0 : index
    %c0_16 = arith.constant 0 : index
    %33 = vector.load %arg5[%c2, %c0_15, %c0_16] : memref<3x72x144xbf16, #tpu.memory_space<vmem>>, vector<1x72x144xbf16>
    %34 = vector.shape_cast %33 : vector<1x72x144xbf16> to vector<72x144xbf16>
    %cst_17 = arith.constant dense<0.000000e+00> : vector<16x144xf32>
    %35 = tpu.matmul %32, %34, %cst_17 {dimension_numbers = #tpu.dot_dimension_numbers<[1], [0], [0], [1], [0, 0, 1, 1], [], []>} : vector<16x72xbf16>, vector<72x144xbf16>, vector<16x144xf32> -> vector<16x144xf32>
    %36 = arith.addf %31, %35 : vector<16x144xf32>
    %c0_18 = arith.constant 0 : index
    %c0_19 = arith.constant 0 : index
    %37 = vector.load %arg6[%c0_18, %c0_19] : memref<1x144xf32, #tpu.memory_space<vmem>>, vector<1x144xf32>
    %38 = vector.broadcast %37 : vector<1x144xf32> to vector<16x144xf32>
    %39 = arith.addf %36, %38 : vector<16x144xf32>
    %40 = arith.truncf %39 : vector<16x144xf32> to vector<16x144xbf16>
    %c0_20 = arith.constant 0 : index
    %c0_21 = arith.constant 0 : index
    %c0_22 = arith.constant 0 : index
    %41 = vector.load %arg9[%c0_20, %c0_21, %c0_22] : memref<1x16x144xbf16, #tpu.memory_space<vmem>>, vector<1x16x144xbf16>
    %42 = vector.shape_cast %41 : vector<1x16x144xbf16> to vector<16x144xbf16>
    %43 = vector.shape_cast %40 : vector<16x144xbf16> to vector<1x16x144xbf16>
    tpu.vector_store %arg9[%c0_20, %c0_21, %c0_22], %43 {strides = array<i32>} : memref<1x16x144xbf16, #tpu.memory_space<vmem>>, vector<1x16x144xbf16>,
    %c0_23 = arith.constant 0 : index
    %c0_24 = arith.constant 0 : index
    %44 = vector.load %arg6[%c0_23, %c0_24] : memref<1x144xf32, #tpu.memory_space<vmem>>, vector<1x144xf32>
    %45 = vector.broadcast %44 : vector<1x144xf32> to vector<16x144xf32>
    %46 = arith.subf %39, %45 : vector<16x144xf32>
    %cst_25 = arith.constant dense<0.000000e+00> : vector<144xf32>
    %47 = vector.multi_reduction <add>, %39, %cst_25 [0] : vector<16x144xf32> to vector<144xf32>
    %48 = vector.shape_cast %47 : vector<144xf32> to vector<1x144xf32>
    %49 = arith.mulf %46, %46 : vector<16x144xf32>
    %cst_26 = arith.constant dense<0.000000e+00> : vector<144xf32>
    %50 = vector.multi_reduction <add>, %49, %cst_26 [0] : vector<16x144xf32> to vector<144xf32>
    %51 = vector.shape_cast %50 : vector<144xf32> to vector<1x144xf32>
    %cst_27 = arith.constant 0.000000e+00 : f32
    %52 = vector.broadcast %cst_27 : f32 to vector<6x144xf32>
    %53 = tpu.concatenate %48, %51, %52 in 0 : vector<1x144xf32>, vector<1x144xf32>, vector<6x144xf32> -> vector<8x144xf32>
    %c0_28 = arith.constant 0 : index
    %c0_29 = arith.constant 0 : index
    %c0_30 = arith.constant 0 : index
    %c0_31 = arith.constant 0 : index
    %54 = vector.load %arg10[%c0_28, %c0_29, %c0_30, %c0_31] : memref<1x1x8x144xf32, #tpu.memory_space<vmem>>, vector<1x1x8x144xf32>
    %55 = vector.shape_cast %54 : vector<1x1x8x144xf32> to vector<8x144xf32>
    %56 = vector.shape_cast %53 : vector<8x144xf32> to vector<1x1x8x144xf32>
    tpu.vector_store %arg10[%c0_28, %c0_29, %c0_30, %c0_31], %56 {strides = array<i32>} : memref<1x1x8x144xf32, #tpu.memory_space<vmem>>, vector<1x1x8x144xf32>,
    return
  }
  func.func @transform_0(%arg0: i32, %arg1: i32) -> (i32, i32, i32) {
    %c0_i32 = arith.constant 0 : i32
    %c0_i32_0 = arith.constant 0 : i32
    %c0_i32_1 = arith.constant 0 : i32
    return %arg0, %c0_i32, %c0_i32_0 : i32, i32, i32
  }
  func.func @transform_1(%arg0: i32, %arg1: i32) -> (i32, i32, i32) {
    %c0_i32 = arith.constant 0 : i32
    %c0_i32_0 = arith.constant 0 : i32
    return %arg0, %arg1, %c0_i32 : i32, i32, i32
  }
  func.func @transform_2(%arg0: i32, %arg1: i32) -> (i32, i32, i32) {
    %c0_i32 = arith.constant 0 : i32
    %c0_i32_0 = arith.constant 0 : i32
    %c0_i32_1 = arith.constant 0 : i32
    return %arg0, %c0_i32, %c0_i32_0 : i32, i32, i32
  }
  func.func @transform_3(%arg0: i32, %arg1: i32) -> (i32, i32, i32) {
    %c0_i32 = arith.constant 0 : i32
    %c0_i32_0 = arith.constant 0 : i32
    %c0_i32_1 = arith.constant 0 : i32
    %c0_i32_2 = arith.constant 0 : i32
    return %c0_i32, %c0_i32_0, %c0_i32_1 : i32, i32, i32
  }
  func.func @transform_4(%arg0: i32, %arg1: i32) -> (i32, i32) {
    %c0_i32 = arith.constant 0 : i32
    %c0_i32_0 = arith.constant 0 : i32
    %c0_i32_1 = arith.constant 0 : i32
    return %c0_i32, %c0_i32_0 : i32, i32
  }
  func.func @transform_5(%arg0: i32, %arg1: i32) -> (i32, i32) {
    %c0_i32 = arith.constant 0 : i32
    %c0_i32_0 = arith.constant 0 : i32
    %c0_i32_1 = arith.constant 0 : i32
    return %c0_i32, %c0_i32_0 : i32, i32
  }
  func.func @transform_6(%arg0: i32, %arg1: i32) -> (i32, i32) {
    %c0_i32 = arith.constant 0 : i32
    %c0_i32_0 = arith.constant 0 : i32
    %c0_i32_1 = arith.constant 0 : i32
    return %c0_i32, %c0_i32_0 : i32, i32
  }
  func.func @transform_7(%arg0: i32, %arg1: i32) -> (i32, i32, i32) {
    %c0_i32 = arith.constant 0 : i32
    %c0_i32_0 = arith.constant 0 : i32
    return %arg0, %arg1, %c0_i32 : i32, i32, i32
  }
  func.func @transform_8(%arg0: i32, %arg1: i32) -> (i32, i32, i32, i32) {
    %c0_i32 = arith.constant 0 : i32
    %c0_i32_0 = arith.constant 0 : i32
    %c0_i32_1 = arith.constant 0 : i32
    return %arg0, %arg1, %c0_i32, %c0_i32_0 : i32, i32, i32, i32
  }
}

module attributes {stable_mosaic.version = 11 : i64} {
  func.func @_conv_kernel(%arg0: i32, %arg1: i32, %arg2: memref<1x16x144xbf16, #tpu.memory_space<vmem>>, %arg3: memref<1x16x144xbf16, #tpu.memory_space<vmem>>, %arg4: memref<1x16x144xbf16, #tpu.memory_space<vmem>>, %arg5: memref<3x144x144xbf16, #tpu.memory_space<vmem>>, %arg6: memref<1x144xf32, #tpu.memory_space<vmem>>, %arg7: memref<1x144xf32, #tpu.memory_space<vmem>>, %arg8: memref<1x144xf32, #tpu.memory_space<vmem>>, %arg9: memref<1x16x144xbf16, #tpu.memory_space<vmem>>, %arg10: memref<1x1x8x144xf32, #tpu.memory_space<vmem>>) attributes {dimension_semantics = [#tpu.dimension_semantics<parallel>, #tpu.dimension_semantics<parallel>], iteration_bounds = array<i64: 2, 1>, scalar_prefetch = 0 : i64, scratch_operands = 0 : i64, tpu.core_type = #tpu.core_type<tc>, window_params = [{transform_indices = @transform_0, window_bounds = array<i64: 1, 16, 144>}, {transform_indices = @transform_1, window_bounds = array<i64: 1, 16, 144>}, {transform_indices = @transform_2, window_bounds = array<i64: 1, 16, 144>}, {pipeline_mode = #tpu.pipeline_mode<synchronous>, transform_indices = @transform_3, window_bounds = array<i64: 3, 144, 144>}, {pipeline_mode = #tpu.pipeline_mode<synchronous>, transform_indices = @transform_4, window_bounds = array<i64: 1, 144>}, {pipeline_mode = #tpu.pipeline_mode<synchronous>, transform_indices = @transform_5, window_bounds = array<i64: 1, 144>}, {pipeline_mode = #tpu.pipeline_mode<synchronous>, transform_indices = @transform_6, window_bounds = array<i64: 1, 144>}, {transform_indices = @transform_7, window_bounds = array<i64: 1, 16, 144>}, {transform_indices = @transform_8, window_bounds = array<i64: 1, 1, 8, 144>}]} {
    %c0 = arith.constant 0 : index
    %c0_0 = arith.constant 0 : index
    %c0_1 = arith.constant 0 : index
    %0 = vector.load %arg3[%c0, %c0_0, %c0_1] : memref<1x16x144xbf16, #tpu.memory_space<vmem>>, vector<1x16x144xbf16>
    %1 = vector.shape_cast %0 : vector<1x16x144xbf16> to vector<16x144xbf16>
    %2 = arith.extf %1 : vector<16x144xbf16> to vector<16x144xf32>
    %c0_2 = arith.constant 0 : index
    %c0_3 = arith.constant 0 : index
    %3 = vector.load %arg7[%c0_2, %c0_3] : memref<1x144xf32, #tpu.memory_space<vmem>>, vector<1x144xf32>
    %4 = vector.broadcast %3 : vector<1x144xf32> to vector<16x144xf32>
    %5 = arith.mulf %2, %4 : vector<16x144xf32>
    %c0_4 = arith.constant 0 : index
    %c0_5 = arith.constant 0 : index
    %6 = vector.load %arg8[%c0_4, %c0_5] : memref<1x144xf32, #tpu.memory_space<vmem>>, vector<1x144xf32>
    %7 = vector.broadcast %6 : vector<1x144xf32> to vector<16x144xf32>
    %8 = arith.addf %5, %7 : vector<16x144xf32>
    %cst = arith.constant 0.000000e+00 : f32
    %9 = vector.broadcast %cst : f32 to vector<16x144xf32>
    %10 = arith.maximumf %8, %9 : vector<16x144xf32>
    %c0_6 = arith.constant 0 : index
    %c15 = arith.constant 15 : index
    %c0_7 = arith.constant 0 : index
    %11 = vector.load %arg2[%c0_6, %c15, %c0_7] : memref<1x16x144xbf16, #tpu.memory_space<vmem>>, vector<1x1x144xbf16>
    %12 = vector.shape_cast %11 : vector<1x1x144xbf16> to vector<1x144xbf16>
    %13 = arith.extf %12 : vector<1x144xbf16> to vector<1x144xf32>
    %c0_8 = arith.constant 0 : index
    %c0_9 = arith.constant 0 : index
    %14 = vector.load %arg7[%c0_8, %c0_9] : memref<1x144xf32, #tpu.memory_space<vmem>>, vector<1x144xf32>
    %15 = arith.mulf %13, %14 : vector<1x144xf32>
    %c0_10 = arith.constant 0 : index
    %c0_11 = arith.constant 0 : index
    %16 = vector.load %arg8[%c0_10, %c0_11] : memref<1x144xf32, #tpu.memory_space<vmem>>, vector<1x144xf32>
    %17 = arith.addf %15, %16 : vector<1x144xf32>
    %cst_12 = arith.constant 0.000000e+00 : f32
    %18 = vector.broadcast %cst_12 : f32 to vector<1x144xf32>
    %19 = arith.maximumf %17, %18 : vector<1x144xf32>
    %c0_i32 = arith.constant 0 : i32
    %20 = arith.cmpi sgt, %arg1, %c0_i32 : i32
    %21 = arith.extui %20 : i1 to i32
    %22 = arith.sitofp %21 : i32 to f32
    %23 = vector.broadcast %22 : f32 to vector<1x144xf32>
    %24 = arith.mulf %19, %23 : vector<1x144xf32>
    %c0_13 = arith.constant 0 : index
    %c0_14 = arith.constant 0 : index
    %c0_15 = arith.constant 0 : index
    %25 = vector.load %arg4[%c0_13, %c0_14, %c0_15] : memref<1x16x144xbf16, #tpu.memory_space<vmem>>, vector<1x1x144xbf16>
    %26 = vector.shape_cast %25 : vector<1x1x144xbf16> to vector<1x144xbf16>
    %27 = arith.extf %26 : vector<1x144xbf16> to vector<1x144xf32>
    %c0_16 = arith.constant 0 : index
    %c0_17 = arith.constant 0 : index
    %28 = vector.load %arg7[%c0_16, %c0_17] : memref<1x144xf32, #tpu.memory_space<vmem>>, vector<1x144xf32>
    %29 = arith.mulf %27, %28 : vector<1x144xf32>
    %c0_18 = arith.constant 0 : index
    %c0_19 = arith.constant 0 : index
    %30 = vector.load %arg8[%c0_18, %c0_19] : memref<1x144xf32, #tpu.memory_space<vmem>>, vector<1x144xf32>
    %31 = arith.addf %29, %30 : vector<1x144xf32>
    %cst_20 = arith.constant 0.000000e+00 : f32
    %32 = vector.broadcast %cst_20 : f32 to vector<1x144xf32>
    %33 = arith.maximumf %31, %32 : vector<1x144xf32>
    %c0_i32_21 = arith.constant 0 : i32
    %34 = arith.cmpi slt, %arg1, %c0_i32_21 : i32
    %35 = arith.extui %34 : i1 to i32
    %36 = arith.sitofp %35 : i32 to f32
    %37 = vector.broadcast %36 : f32 to vector<1x144xf32>
    %38 = arith.mulf %33, %37 : vector<1x144xf32>
    %39 = tpu.concatenate %24, %10, %38 in 0 : vector<1x144xf32>, vector<16x144xf32>, vector<1x144xf32> -> vector<18x144xf32>
    %40 = arith.truncf %39 : vector<18x144xf32> to vector<18x144xbf16>
    %cst_22 = arith.constant 0.000000e+00 : f32
    %41 = vector.broadcast %cst_22 : f32 to vector<16x144xf32>
    %42 = vector.extract_strided_slice %40 {offsets = [0, 0], sizes = [16, 144], strides = [1, 1]} : vector<18x144xbf16> to vector<16x144xbf16>
    %c0_23 = arith.constant 0 : index
    %c0_24 = arith.constant 0 : index
    %c0_25 = arith.constant 0 : index
    %43 = vector.load %arg5[%c0_23, %c0_24, %c0_25] : memref<3x144x144xbf16, #tpu.memory_space<vmem>>, vector<1x144x144xbf16>
    %44 = vector.shape_cast %43 : vector<1x144x144xbf16> to vector<144x144xbf16>
    %cst_26 = arith.constant dense<0.000000e+00> : vector<16x144xf32>
    %45 = tpu.matmul %42, %44, %cst_26 {dimension_numbers = #tpu.dot_dimension_numbers<[1], [0], [0], [1], [0, 0, 1, 1], [], []>} : vector<16x144xbf16>, vector<144x144xbf16>, vector<16x144xf32> -> vector<16x144xf32>
    %46 = arith.addf %41, %45 : vector<16x144xf32>
    %47 = vector.extract_strided_slice %40 {offsets = [1, 0], sizes = [16, 144], strides = [1, 1]} : vector<18x144xbf16> to vector<16x144xbf16>
    %c1 = arith.constant 1 : index
    %c0_27 = arith.constant 0 : index
    %c0_28 = arith.constant 0 : index
    %48 = vector.load %arg5[%c1, %c0_27, %c0_28] : memref<3x144x144xbf16, #tpu.memory_space<vmem>>, vector<1x144x144xbf16>
    %49 = vector.shape_cast %48 : vector<1x144x144xbf16> to vector<144x144xbf16>
    %cst_29 = arith.constant dense<0.000000e+00> : vector<16x144xf32>
    %50 = tpu.matmul %47, %49, %cst_29 {dimension_numbers = #tpu.dot_dimension_numbers<[1], [0], [0], [1], [0, 0, 1, 1], [], []>} : vector<16x144xbf16>, vector<144x144xbf16>, vector<16x144xf32> -> vector<16x144xf32>
    %51 = arith.addf %46, %50 : vector<16x144xf32>
    %52 = vector.extract_strided_slice %40 {offsets = [2, 0], sizes = [16, 144], strides = [1, 1]} : vector<18x144xbf16> to vector<16x144xbf16>
    %c2 = arith.constant 2 : index
    %c0_30 = arith.constant 0 : index
    %c0_31 = arith.constant 0 : index
    %53 = vector.load %arg5[%c2, %c0_30, %c0_31] : memref<3x144x144xbf16, #tpu.memory_space<vmem>>, vector<1x144x144xbf16>
    %54 = vector.shape_cast %53 : vector<1x144x144xbf16> to vector<144x144xbf16>
    %cst_32 = arith.constant dense<0.000000e+00> : vector<16x144xf32>
    %55 = tpu.matmul %52, %54, %cst_32 {dimension_numbers = #tpu.dot_dimension_numbers<[1], [0], [0], [1], [0, 0, 1, 1], [], []>} : vector<16x144xbf16>, vector<144x144xbf16>, vector<16x144xf32> -> vector<16x144xf32>
    %56 = arith.addf %51, %55 : vector<16x144xf32>
    %c0_33 = arith.constant 0 : index
    %c0_34 = arith.constant 0 : index
    %57 = vector.load %arg6[%c0_33, %c0_34] : memref<1x144xf32, #tpu.memory_space<vmem>>, vector<1x144xf32>
    %58 = vector.broadcast %57 : vector<1x144xf32> to vector<16x144xf32>
    %59 = arith.addf %56, %58 : vector<16x144xf32>
    %60 = arith.truncf %59 : vector<16x144xf32> to vector<16x144xbf16>
    %c0_35 = arith.constant 0 : index
    %c0_36 = arith.constant 0 : index
    %c0_37 = arith.constant 0 : index
    %61 = vector.load %arg9[%c0_35, %c0_36, %c0_37] : memref<1x16x144xbf16, #tpu.memory_space<vmem>>, vector<1x16x144xbf16>
    %62 = vector.shape_cast %61 : vector<1x16x144xbf16> to vector<16x144xbf16>
    %63 = vector.shape_cast %60 : vector<16x144xbf16> to vector<1x16x144xbf16>
    tpu.vector_store %arg9[%c0_35, %c0_36, %c0_37], %63 {strides = array<i32>} : memref<1x16x144xbf16, #tpu.memory_space<vmem>>, vector<1x16x144xbf16>,
    %c0_38 = arith.constant 0 : index
    %c0_39 = arith.constant 0 : index
    %64 = vector.load %arg6[%c0_38, %c0_39] : memref<1x144xf32, #tpu.memory_space<vmem>>, vector<1x144xf32>
    %65 = vector.broadcast %64 : vector<1x144xf32> to vector<16x144xf32>
    %66 = arith.subf %59, %65 : vector<16x144xf32>
    %cst_40 = arith.constant dense<0.000000e+00> : vector<144xf32>
    %67 = vector.multi_reduction <add>, %59, %cst_40 [0] : vector<16x144xf32> to vector<144xf32>
    %68 = vector.shape_cast %67 : vector<144xf32> to vector<1x144xf32>
    %69 = arith.mulf %66, %66 : vector<16x144xf32>
    %cst_41 = arith.constant dense<0.000000e+00> : vector<144xf32>
    %70 = vector.multi_reduction <add>, %69, %cst_41 [0] : vector<16x144xf32> to vector<144xf32>
    %71 = vector.shape_cast %70 : vector<144xf32> to vector<1x144xf32>
    %cst_42 = arith.constant 0.000000e+00 : f32
    %72 = vector.broadcast %cst_42 : f32 to vector<6x144xf32>
    %73 = tpu.concatenate %68, %71, %72 in 0 : vector<1x144xf32>, vector<1x144xf32>, vector<6x144xf32> -> vector<8x144xf32>
    %c0_43 = arith.constant 0 : index
    %c0_44 = arith.constant 0 : index
    %c0_45 = arith.constant 0 : index
    %c0_46 = arith.constant 0 : index
    %74 = vector.load %arg10[%c0_43, %c0_44, %c0_45, %c0_46] : memref<1x1x8x144xf32, #tpu.memory_space<vmem>>, vector<1x1x8x144xf32>
    %75 = vector.shape_cast %74 : vector<1x1x8x144xf32> to vector<8x144xf32>
    %76 = vector.shape_cast %73 : vector<8x144xf32> to vector<1x1x8x144xf32>
    tpu.vector_store %arg10[%c0_43, %c0_44, %c0_45, %c0_46], %76 {strides = array<i32>} : memref<1x1x8x144xf32, #tpu.memory_space<vmem>>, vector<1x1x8x144xf32>,
    return
  }
  func.func @transform_0(%arg0: i32, %arg1: i32) -> (i32, i32, i32) {
    %c0_i32 = arith.constant 0 : i32
    %c0_i32_0 = arith.constant 0 : i32
    %c0_i32_1 = arith.constant 0 : i32
    return %arg0, %c0_i32, %c0_i32_0 : i32, i32, i32
  }
  func.func @transform_1(%arg0: i32, %arg1: i32) -> (i32, i32, i32) {
    %c0_i32 = arith.constant 0 : i32
    %c0_i32_0 = arith.constant 0 : i32
    return %arg0, %arg1, %c0_i32 : i32, i32, i32
  }
  func.func @transform_2(%arg0: i32, %arg1: i32) -> (i32, i32, i32) {
    %c0_i32 = arith.constant 0 : i32
    %c0_i32_0 = arith.constant 0 : i32
    %c0_i32_1 = arith.constant 0 : i32
    return %arg0, %c0_i32, %c0_i32_0 : i32, i32, i32
  }
  func.func @transform_3(%arg0: i32, %arg1: i32) -> (i32, i32, i32) {
    %c0_i32 = arith.constant 0 : i32
    %c0_i32_0 = arith.constant 0 : i32
    %c0_i32_1 = arith.constant 0 : i32
    %c0_i32_2 = arith.constant 0 : i32
    return %c0_i32, %c0_i32_0, %c0_i32_1 : i32, i32, i32
  }
  func.func @transform_4(%arg0: i32, %arg1: i32) -> (i32, i32) {
    %c0_i32 = arith.constant 0 : i32
    %c0_i32_0 = arith.constant 0 : i32
    %c0_i32_1 = arith.constant 0 : i32
    return %c0_i32, %c0_i32_0 : i32, i32
  }
  func.func @transform_5(%arg0: i32, %arg1: i32) -> (i32, i32) {
    %c0_i32 = arith.constant 0 : i32
    %c0_i32_0 = arith.constant 0 : i32
    %c0_i32_1 = arith.constant 0 : i32
    return %c0_i32, %c0_i32_0 : i32, i32
  }
  func.func @transform_6(%arg0: i32, %arg1: i32) -> (i32, i32) {
    %c0_i32 = arith.constant 0 : i32
    %c0_i32_0 = arith.constant 0 : i32
    %c0_i32_1 = arith.constant 0 : i32
    return %c0_i32, %c0_i32_0 : i32, i32
  }
  func.func @transform_7(%arg0: i32, %arg1: i32) -> (i32, i32, i32) {
    %c0_i32 = arith.constant 0 : i32
    %c0_i32_0 = arith.constant 0 : i32
    return %arg0, %arg1, %c0_i32 : i32, i32, i32
  }
  func.func @transform_8(%arg0: i32, %arg1: i32) -> (i32, i32, i32, i32) {
    %c0_i32 = arith.constant 0 : i32
    %c0_i32_0 = arith.constant 0 : i32
    %c0_i32_1 = arith.constant 0 : i32
    return %arg0, %arg1, %c0_i32, %c0_i32_0 : i32, i32, i32, i32
  }
}

module attributes {stable_mosaic.version = 11 : i64} {
  func.func @_affine_relu_kernel(%arg0: i32, %arg1: memref<32x144xbf16, #tpu.memory_space<vmem>>, %arg2: memref<1x144xf32, #tpu.memory_space<vmem>>, %arg3: memref<1x144xf32, #tpu.memory_space<vmem>>, %arg4: memref<32x144xf32, #tpu.memory_space<vmem>>) attributes {dimension_semantics = [#tpu.dimension_semantics<parallel>], iteration_bounds = array<i64: 1>, scalar_prefetch = 0 : i64, scratch_operands = 0 : i64, tpu.core_type = #tpu.core_type<tc>, window_params = [{transform_indices = @transform_0, window_bounds = array<i64: 32, 144>}, {pipeline_mode = #tpu.pipeline_mode<synchronous>, transform_indices = @transform_1, window_bounds = array<i64: 1, 144>}, {pipeline_mode = #tpu.pipeline_mode<synchronous>, transform_indices = @transform_2, window_bounds = array<i64: 1, 144>}, {transform_indices = @transform_3, window_bounds = array<i64: 32, 144>}]} {
    %c0 = arith.constant 0 : index
    %c0_0 = arith.constant 0 : index
    %0 = vector.load %arg1[%c0, %c0_0] : memref<32x144xbf16, #tpu.memory_space<vmem>>, vector<32x144xbf16>
    %1 = arith.extf %0 : vector<32x144xbf16> to vector<32x144xf32>
    %c0_1 = arith.constant 0 : index
    %c0_2 = arith.constant 0 : index
    %2 = vector.load %arg2[%c0_1, %c0_2] : memref<1x144xf32, #tpu.memory_space<vmem>>, vector<1x144xf32>
    %3 = vector.broadcast %2 : vector<1x144xf32> to vector<32x144xf32>
    %4 = arith.mulf %1, %3 : vector<32x144xf32>
    %c0_3 = arith.constant 0 : index
    %c0_4 = arith.constant 0 : index
    %5 = vector.load %arg3[%c0_3, %c0_4] : memref<1x144xf32, #tpu.memory_space<vmem>>, vector<1x144xf32>
    %6 = vector.broadcast %5 : vector<1x144xf32> to vector<32x144xf32>
    %7 = arith.addf %4, %6 : vector<32x144xf32>
    %cst = arith.constant 0.000000e+00 : f32
    %8 = vector.broadcast %cst : f32 to vector<32x144xf32>
    %9 = arith.maximumf %7, %8 : vector<32x144xf32>
    %c0_5 = arith.constant 0 : index
    %c0_6 = arith.constant 0 : index
    %10 = vector.load %arg4[%c0_5, %c0_6] : memref<32x144xf32, #tpu.memory_space<vmem>>, vector<32x144xf32>
    tpu.vector_store %arg4[%c0_5, %c0_6], %9 {strides = array<i32>} : memref<32x144xf32, #tpu.memory_space<vmem>>, vector<32x144xf32>,
    return
  }
  func.func @transform_0(%arg0: i32) -> (i32, i32) {
    %c0_i32 = arith.constant 0 : i32
    %c0_i32_0 = arith.constant 0 : i32
    return %arg0, %c0_i32 : i32, i32
  }
  func.func @transform_1(%arg0: i32) -> (i32, i32) {
    %c0_i32 = arith.constant 0 : i32
    %c0_i32_0 = arith.constant 0 : i32
    %c0_i32_1 = arith.constant 0 : i32
    return %c0_i32, %c0_i32_0 : i32, i32
  }
  func.func @transform_2(%arg0: i32) -> (i32, i32) {
    %c0_i32 = arith.constant 0 : i32
    %c0_i32_0 = arith.constant 0 : i32
    %c0_i32_1 = arith.constant 0 : i32
    return %c0_i32, %c0_i32_0 : i32, i32
  }
  func.func @transform_3(%arg0: i32) -> (i32, i32) {
    %c0_i32 = arith.constant 0 : i32
    %c0_i32_0 = arith.constant 0 : i32
    return %arg0, %c0_i32 : i32, i32
  }
}

</mosaic_0001>

<llo_original>
// kernel: tile.29
$region0: #{tile.29}
  #allocation2 [shape = 's32[1]{0}', space=sflag, size = 0x4, scoped, tag = 'scoped memory for tile.29']
  %s0 = inlined_call_operand.hbm [shape: f32[8], index: 0, kind: input, shape index: {}]
  %s1 = inlined_call_operand.vmem [shape: f32[18,8], index: 1, kind: output, shape index: {}]
  $region1: #{tile.29} parent=0
    #allocation0 [shape = 'u8[512]{0}', space=vmem, size = 0x400, scoped, tag = 'operand span for operand 0']
    #allocation1 [shape = 's32[1]{0}', space=sflag, size = 0x4, scoped, tag = 'scoped memory for tile.29']
    %2 = vsyncpa [#allocation1], 0
    // Predicated region
    $region2: #{tile.29} parent=1 // pred_check
      _
    $region3: #{tile.29} parent=1 // pred_check_branch
      %4 = sbr.rel (0) target = $region5
    $region4: #{tile.29} parent=1 // pred_region
      %6 = vsyncadd [#allocation1], 0
      %s8 = sshll.u32 %s0, 4
      %s9 = int_to_ptr.hbm [resolvable:$true] %s8
      %s10 = sshll.u32 [#allocation0], 4
      %s11 = int_to_ptr.vmem [resolvable:$true] %s10
      %13 = dma.hbm_to_vmem [thread:$0]  %s9, 16, %s11, [#allocation1]
    $region5: #{tile.29} parent=1 // pred_fallthru
      _
    // Predicated region
    $region6: #{tile.29} parent=1 // pred_check
      _
    $region7: #{tile.29} parent=1 // pred_check_branch
      %15 = sbr.rel (0) target = $region9
    $region8: #{tile.29} parent=1 // pred_region
      %17 = dma.done [#allocation1], 16
    $region9: #{tile.29} parent=1 // pred_fallthru
      _
    %v18 = vld [vmem:[#allocation0] ss:$0 sm:$0xff]
    %19 = vst [vmem:[%s1] sm:$0xff] %v18
    %s20 = scalar_lea.vmem %s1, 8
    %21 = vst [vmem:[%s20] sm:$0xff] %v18
    %s22 = scalar_lea.vmem %s1, 16
    %23 = vst [vmem:[%s22] sm:$0xff] %v18
    %24 = vsyncpa [#allocation1], 1

// kernel: convolution_forward.3
$region0: #{convolution_forward.3}
  #allocation0 [shape = 'u32[]', space=smem, size = 0x4, offset = 0x4, fixed_abs, tag = 'smem constant byte address 0x4 - core index']
  #allocation1 [shape = 'u32[72,128]{1,0:T(1,128)}', space=vmem, size = 0x9000, scoped, tag = 'internal scratch']
  %s0 = inlined_call_operand.vmem [shape: bf16[2,16,72], index: 0, kind: input, shape index: {}, may-alias: {0,1,2}]
  %s1 = inlined_call_operand.vmem [shape: bf16[2,16,72], index: 1, kind: input, shape index: {}, may-alias: {0,1,2}]
  %s2 = inlined_call_operand.vmem [shape: bf16[2,16,72], index: 2, kind: input, shape index: {}, may-alias: {0,1,2}]
  %s3 = inlined_call_operand.vmem [shape: bf16[3,72,144], index: 3, kind: input, shape index: {}]
  %s4 = inlined_call_operand.vmem [shape: f32[1,144], index: 4, kind: input, shape index: {}]
  %s5 = inlined_call_operand.vmem [shape: f32[1,72], index: 5, kind: input, shape index: {}]
  %s6 = inlined_call_operand.vmem [shape: f32[1,72], index: 6, kind: input, shape index: {}]
  %s7 = inlined_call_operand.vmem [shape: bf16[2,16,144], index: 7, kind: output, shape index: {0}]
  %s8 = inlined_call_operand.vmem [shape: f32[2,1,8,144], index: 8, kind: output, shape index: {1}]
  %9 = xla_tuple %s7, %s8
  %s10 = sld [smem:[#allocation0]]
  $region69: #{convolution_forward.3} parent=0
    _
  %s12 = ssub.s32 1, %s10
  %s13 = scalar_select 0, %s12, %s10
  loop: start=0, step=1, limit=4
  $region2: #{convolution_forward.3} parent=0 // loop_pre_header
    _
  $region3: #{convolution_forward.3} parent=0 // loop_header
    %s15 = sphi 0, %s19
    %p16 = scmp.ge.s32.totalorder %s15, 4
    %s22 = sphi 0, %s34
    %s23 = sphi 0, %s30
    %s24 = sphi 0, %s22
    %s25 = sphi 0, %s23
    %s26 = sphi 0, %s24
    %s27 = sphi 0, %s25
    %s37 = sphi 0, %s39
    %s40 = sphi 0, %s37
    %s41 = sphi 0, %s40
    %s57 = sphi 0, %s41
    %s65 = sphi 0, %s67
    %s68 = sphi 0, %s65
    %s69 = sphi 0, %s68
    %s85 = sphi 0, %s69
    %s91 = sphi 0, %s93
    %s94 = sphi 0, %s91
    %s95 = sphi 0, %s94
    %s111 = sphi 0, %s95
    %s115 = sphi 0, %s115
    %s117 = sphi 0, %s115
    %s118 = sphi 0, %s117
    %s132 = sphi 0, %s118
    %s136 = sphi 0, %s136
    %s138 = sphi 0, %s136
    %s139 = sphi 0, %s138
    %s153 = sphi 0, %s139
    %s157 = sphi 0, %s157
    %s159 = sphi 0, %s157
    %s160 = sphi 0, %s159
    %s174 = sphi 0, %s160
    %s178 = sphi 0, %s178
    %s180 = sphi 0, %s178
    %s181 = sphi 0, %s180
    %s195 = sphi 0, %s181
    %s203 = sphi 0, %s205
    %s206 = sphi 0, %s203
    %s207 = sphi 0, %s206
    %s223 = sphi 0, %s207
    %s231 = sphi 0, %s233
    %s234 = sphi 0, %s231
    %s235 = sphi 0, %s234
    %s251 = sphi 0, %s235
  $region4: #{convolution_forward.3} parent=0 // loop_header_branch
    %18 = sbr.rel (%p16) target = $region8
  $region5: #{convolution_forward.3} parent=0 // loop_body
    %s20 = ssub.s32 %s15, 1
    %s21 = ssub.s32 %s15, 2
    %s28 = sadd.s32 1, %s23
    %p29 = scmp.ge.s32.totalorder %s28, 1
    %s30 = scalar_select %p29, 0, %s28
    %s31 = sadd.s32 1, %s22
    %s32 = scalar_select %p29, %s31, %s22
    %p33 = scmp.ge.s32.totalorder %s32, 2
    %s34 = scalar_select %p33, 0, %s32
    %s35 = ssub.s32 %s22, %s34
    %p36 = scmp.eq.s32.totalorder %s35, 0
    %s38 = sadd.s32 %s37, 1
    %s39 = scalar_select %p36, %s37, %s38
    %p42 = pneg %p36
    %p43 = scmp.eq.s32.totalorder %s15, 1
    %p44 = por %p42, %p43
    %p45 = scmp.ne.s32.totalorder %s37, %s40
    %p46 = scmp.eq.s32.totalorder %s15, 0
    %p47 = por %p45, %p46
    %p48 = scmp.ne.s32.totalorder %s37, %s40
    %p49 = scmp.eq.s32.totalorder %s20, 1
    %p50 = por %p48, %p49
    %p51 = scmp.ne.s32.totalorder %s40, %s41
    %p52 = scmp.eq.s32.totalorder %s20, 0
    %p53 = por %p51, %p52
    %p54 = scmp.ne.s32.totalorder %s40, %s41
    %p55 = scmp.eq.s32.totalorder %s21, 1
    %p56 = por %p54, %p55
    %p58 = scmp.ne.s32.totalorder %s41, %s57
    %p59 = scmp.eq.s32.totalorder %s21, 0
    %p60 = por %p58, %p59
    %s61 = ssub.s32 %s22, %s34
    %s62 = ssub.s32 %s23, %s30
    %s63 = sor.u32 %s61, %s62
    %p64 = scmp.eq.s32.totalorder %s63, 0
    %s66 = sadd.s32 %s65, 1
    %s67 = scalar_select %p64, %s65, %s66
    %p70 = pneg %p64
    %p71 = scmp.eq.s32.totalorder %s15, 1
    %p72 = por %p70, %p71
    %p73 = scmp.ne.s32.totalorder %s65, %s68
    %p74 = scmp.eq.s32.totalorder %s15, 0
    %p75 = por %p73, %p74
    %p76 = scmp.ne.s32.totalorder %s65, %s68
    %p77 = scmp.eq.s32.totalorder %s20, 1
    %p78 = por %p76, %p77
    %p79 = scmp.ne.s32.totalorder %s68, %s69
    %p80 = scmp.eq.s32.totalorder %s20, 0
    %p81 = por %p79, %p80
    %p82 = scmp.ne.s32.totalorder %s68, %s69
    %p83 = scmp.eq.s32.totalorder %s21, 1
    %p84 = por %p82, %p83
    %p86 = scmp.ne.s32.totalorder %s69, %s85
    %p87 = scmp.eq.s32.totalorder %s21, 0
    %p88 = por %p86, %p87
    %s89 = ssub.s32 %s22, %s34
    %p90 = scmp.eq.s32.totalorder %s89, 0
    %s92 = sadd.s32 %s91, 1
    %s93 = scalar_select %p90, %s91, %s92
    %p96 = pneg %p90
    %p97 = scmp.eq.s32.totalorder %s15, 1
    %p98 = por %p96, %p97
    %p99 = scmp.ne.s32.totalorder %s91, %s94
    %p100 = scmp.eq.s32.totalorder %s15, 0
    %p101 = por %p99, %p100
    %p102 = scmp.ne.s32.totalorder %s91, %s94
    %p103 = scmp.eq.s32.totalorder %s20, 1
    %p104 = por %p102, %p103
    %p105 = scmp.ne.s32.totalorder %s94, %s95
    %p106 = scmp.eq.s32.totalorder %s20, 0
    %p107 = por %p105, %p106
    %p108 = scmp.ne.s32.totalorder %s94, %s95
    %p109 = scmp.eq.s32.totalorder %s21, 1
    %p110 = por %p108, %p109
    %p112 = scmp.ne.s32.totalorder %s95, %s111
    %p113 = scmp.eq.s32.totalorder %s21, 0
    %p114 = por %p112, %p113
    %s116 = sadd.s32 %s115, 1
    %p119 = scmp.eq.s32.totalorder %s15, 1
    %p120 = scmp.ne.s32.totalorder %s115, %s117
    %p121 = scmp.eq.s32.totalorder %s15, 0
    %p122 = por %p120, %p121
    %p123 = scmp.ne.s32.totalorder %s115, %s117
    %p124 = scmp.eq.s32.totalorder %s20, 1
    %p125 = por %p123, %p124
    %p126 = scmp.ne.s32.totalorder %s117, %s118
    %p127 = scmp.eq.s32.totalorder %s20, 0
    %p128 = por %p126, %p127
    %p129 = scmp.ne.s32.totalorder %s117, %s118
    %p130 = scmp.eq.s32.totalorder %s21, 1
    %p131 = por %p129, %p130
    %p133 = scmp.ne.s32.totalorder %s118, %s132
    %p134 = scmp.eq.s32.totalorder %s21, 0
    %p135 = por %p133, %p134
    %s137 = sadd.s32 %s136, 1
    %p140 = scmp.eq.s32.totalorder %s15, 1
    %p141 = scmp.ne.s32.totalorder %s136, %s138
    %p142 = scmp.eq.s32.totalorder %s15, 0
    %p143 = por %p141, %p142
    %p144 = scmp.ne.s32.totalorder %s136, %s138
    %p145 = scmp.eq.s32.totalorder %s20, 1
    %p146 = por %p144, %p145
    %p147 = scmp.ne.s32.totalorder %s138, %s139
    %p148 = scmp.eq.s32.totalorder %s20, 0
    %p149 = por %p147, %p148
    %p150 = scmp.ne.s32.totalorder %s138, %s139
    %p151 = scmp.eq.s32.totalorder %s21, 1
    %p152 = por %p150, %p151
    %p154 = scmp.ne.s32.totalorder %s139, %s153
    %p155 = scmp.eq.s32.totalorder %s21, 0
    %p156 = por %p154, %p155
    %s158 = sadd.s32 %s157, 1
    %p161 = scmp.eq.s32.totalorder %s15, 1
    %p162 = scmp.ne.s32.totalorder %s157, %s159
    %p163 = scmp.eq.s32.totalorder %s15, 0
    %p164 = por %p162, %p163
    %p165 = scmp.ne.s32.totalorder %s157, %s159
    %p166 = scmp.eq.s32.totalorder %s20, 1
    %p167 = por %p165, %p166
    %p168 = scmp.ne.s32.totalorder %s159, %s160
    %p169 = scmp.eq.s32.totalorder %s20, 0
    %p170 = por %p168, %p169
    %p171 = scmp.ne.s32.totalorder %s159, %s160
    %p172 = scmp.eq.s32.totalorder %s21, 1
    %p173 = por %p171, %p172
    %p175 = scmp.ne.s32.totalorder %s160, %s174
    %p176 = scmp.eq.s32.totalorder %s21, 0
    %p177 = por %p175, %p176
    %s179 = sadd.s32 %s178, 1
    %p182 = scmp.eq.s32.totalorder %s15, 1
    %p183 = scmp.ne.s32.totalorder %s178, %s180
    %p184 = scmp.eq.s32.totalorder %s15, 0
    %p185 = por %p183, %p184
    %p186 = scmp.ne.s32.totalorder %s178, %s180
    %p187 = scmp.eq.s32.totalorder %s20, 1
    %p188 = por %p186, %p187
    %p189 = scmp.ne.s32.totalorder %s180, %s181
    %p190 = scmp.eq.s32.totalorder %s20, 0
    %p191 = por %p189, %p190
    %p192 = scmp.ne.s32.totalorder %s180, %s181
    %p193 = scmp.eq.s32.totalorder %s21, 1
    %p194 = por %p192, %p193
    %p196 = scmp.ne.s32.totalorder %s181, %s195
    %p197 = scmp.eq.s32.totalorder %s21, 0
    %p198 = por %p196, %p197
    %s199 = ssub.s32 %s22, %s34
    %s200 = ssub.s32 %s23, %s30
    %s201 = sor.u32 %s199, %s200
    %p202 = scmp.eq.s32.totalorder %s201, 0
    %s204 = sadd.s32 %s203, 1
    %s205 = scalar_select %p202, %s203, %s204
    %p208 = pneg %p202
    %p209 = scmp.eq.s32.totalorder %s15, 1
    %p210 = por %p208, %p209
    %p211 = scmp.ne.s32.totalorder %s203, %s206
    %p212 = scmp.eq.s32.totalorder %s15, 0
    %p213 = por %p211, %p212
    %p214 = scmp.ne.s32.totalorder %s203, %s206
    %p215 = scmp.eq.s32.totalorder %s20, 1
    %p216 = por %p214, %p215
    %p217 = scmp.ne.s32.totalorder %s206, %s207
    %p218 = scmp.eq.s32.totalorder %s20, 0
    %p219 = por %p217, %p218
    %p220 = scmp.ne.s32.totalorder %s206, %s207
    %p221 = scmp.eq.s32.totalorder %s21, 1
    %p222 = por %p220, %p221
    %p224 = scmp.ne.s32.totalorder %s207, %s223
    %p225 = scmp.eq.s32.totalorder %s21, 0
    %p226 = por %p224, %p225
    %s227 = ssub.s32 %s22, %s34
    %s228 = ssub.s32 %s23, %s30
    %s229 = sor.u32 %s227, %s228
    %p230 = scmp.eq.s32.totalorder %s229, 0
    %s232 = sadd.s32 %s231, 1
    %s233 = scalar_select %p230, %s231, %s232
    %p236 = pneg %p230
    %p237 = scmp.eq.s32.totalorder %s15, 1
    %p238 = por %p236, %p237
    %p239 = scmp.ne.s32.totalorder %s231, %s234
    %p240 = scmp.eq.s32.totalorder %s15, 0
    %p241 = por %p239, %p240
    %p242 = scmp.ne.s32.totalorder %s231, %s234
    %p243 = scmp.eq.s32.totalorder %s20, 1
    %p244 = por %p242, %p243
    %p245 = scmp.ne.s32.totalorder %s234, %s235
    %p246 = scmp.eq.s32.totalorder %s20, 0
    %p247 = por %p245, %p246
    %p248 = scmp.ne.s32.totalorder %s234, %s235
    %p249 = scmp.eq.s32.totalorder %s21, 1
    %p250 = por %p248, %p249
    %p252 = scmp.ne.s32.totalorder %s235, %s251
    %p253 = scmp.eq.s32.totalorder %s21, 0
    %p254 = por %p252, %p253
    %p255 = scmp.le.s32.totalorder 1, %s15
    %p256 = scmp.lt.s32.totalorder %s15, 3
    %p257 = pnand %p255, %p256
    %p258 = pneg %p257
    // Predicated region
    $region9: #{convolution_forward.3} parent=5 // pred_check
      _
    $region10: #{convolution_forward.3} parent=5 // pred_check_branch
      %260 = sbr.rel (%p257) target = $region12
    $region11: #{convolution_forward.3} parent=5 // pred_region
      %s261 = ssub.s32 %s15, 1
      // Predicated region
      $region13: #{convolution_forward.3} parent=11 // pred_check
        %p262 = pneg %p128
      $region14: #{convolution_forward.3} parent=11 // pred_check_branch
        %264 = sbr.rel (%p262) target = $region16
      $region15: #{convolution_forward.3} parent=11 // pred_region
        _
      $region16: #{convolution_forward.3} parent=11 // pred_fallthru
        _
      // Predicated region
      $region17: #{convolution_forward.3} parent=11 // pred_check
        %p265 = pneg %p149
      $region18: #{convolution_forward.3} parent=11 // pred_check_branch
        %267 = sbr.rel (%p265) target = $region20
      $region19: #{convolution_forward.3} parent=11 // pred_region
        _
      $region20: #{convolution_forward.3} parent=11 // pred_fallthru
        _
      // Predicated region
      $region21: #{convolution_forward.3} parent=11 // pred_check
        %p268 = pneg %p170
      $region22: #{convolution_forward.3} parent=11 // pred_check_branch
        %270 = sbr.rel (%p268) target = $region24
      $region23: #{convolution_forward.3} parent=11 // pred_region
        _
      $region24: #{convolution_forward.3} parent=11 // pred_fallthru
        _
      // Predicated region
      $region25: #{convolution_forward.3} parent=11 // pred_check
        %p271 = pneg %p191
      $region26: #{convolution_forward.3} parent=11 // pred_check_branch
        %273 = sbr.rel (%p271) target = $region28
      $region27: #{convolution_forward.3} parent=11 // pred_region
        _
      $region28: #{convolution_forward.3} parent=11 // pred_fallthru
        _
    $region12: #{convolution_forward.3} parent=5 // pred_fallthru
      _
    %p274 = scmp.lt.s32.totalorder %s15, 2
    // Predicated region
    $region29: #{convolution_forward.3} parent=5 // pred_check
      %p275 = pneg %p274
    $region30: #{convolution_forward.3} parent=5 // pred_check_branch
      %277 = sbr.rel (%p275) target = $region32
    $region31: #{convolution_forward.3} parent=5 // pred_region
      // Predicated region
      $region33: #{convolution_forward.3} parent=31 // pred_check
        %p278 = pneg %p47
      $region34: #{convolution_forward.3} parent=31 // pred_check_branch
        %280 = sbr.rel (%p278) target = $region36
      $region35: #{convolution_forward.3} parent=31 // pred_region
        %p281 = scmp.lt.s32.totalorder %s22, 1
        %s282 = scalar_select %p281, %s22, 1
        %s283 = smul.addr %s282, 2
        %s284 = smul.addr %s283, 4
        %s285 = scalar_lea.vmem %s0, %s284
      $region36: #{convolution_forward.3} parent=31 // pred_fallthru
        _
      // Predicated region
      $region37: #{convolution_forward.3} parent=31 // pred_check
        %p286 = pneg %p75
      $region38: #{convolution_forward.3} parent=31 // pred_check_branch
        %288 = sbr.rel (%p286) target = $region40
      $region39: #{convolution_forward.3} parent=31 // pred_region
        %s289 = smul.u32 2, %s23
        %p290 = scmp.lt.s32.totalorder %s22, 1
        %s291 = scalar_select %p290, %s22, 1
        %p292 = scmp.lt.s32.totalorder %s289, 1
        %s293 = scalar_select %p292, %s289, 1
        %s294 = smul.addr %s291, 2
        %s295 = sadd.s32 %s293, %s294
        %s296 = smul.addr %s295, 4
        %s297 = scalar_lea.vmem %s1, %s296
        %s298 = smul.u32 2, %s23
      $region40: #{convolution_forward.3} parent=31 // pred_fallthru
        _
      // Predicated region
      $region41: #{convolution_forward.3} parent=31 // pred_check
        %p299 = pneg %p101
      $region42: #{convolution_forward.3} parent=31 // pred_check_branch
        %301 = sbr.rel (%p299) target = $region44
      $region43: #{convolution_forward.3} parent=31 // pred_region
        %p302 = scmp.lt.s32.totalorder %s22, 1
        %s303 = scalar_select %p302, %s22, 1
        %s304 = smul.addr %s303, 2
        %s305 = smul.addr %s304, 4
        %s306 = scalar_lea.vmem %s2, %s305
      $region44: #{convolution_forward.3} parent=31 // pred_fallthru
        _
    $region32: #{convolution_forward.3} parent=5 // pred_fallthru
      _
    %p307 = scmp.le.s32.totalorder 1, %s15
    %p308 = scmp.lt.s32.totalorder %s15, 3
    %p309 = pnand %p307, %p308
    %p310 = pneg %p309
    // Predicated region
    $region45: #{convolution_forward.3} parent=5 // pred_check
      _
    $region46: #{convolution_forward.3} parent=5 // pred_check_branch
      %312 = sbr.rel (%p309) target = $region48
    $region47: #{convolution_forward.3} parent=5 // pred_region
      %s313 = ssub.s32 %s15, 1
      %p314 = scmp.lt.s32.totalorder %s24, 1
      %s315 = scalar_select %p314, %s24, 1
      %s316 = smul.addr %s315, 2
      %s317 = smul.addr %s316, 4
      %s318 = scalar_lea.vmem %s0, %s317
      %p319 = pneg %p53
      %p320 = pneg %p50
      %s321 = smul.u32 2, %s25
      %p322 = scmp.lt.s32.totalorder %s24, 1
      %s323 = scalar_select %p322, %s24, 1
      %p324 = scmp.lt.s32.totalorder %s321, 1
      %s325 = scalar_select %p324, %s321, 1
      %s326 = smul.addr %s323, 2
      %s327 = sadd.s32 %s325, %s326
      %s328 = smul.addr %s327, 4
      %s329 = scalar_lea.vmem %s1, %s328
      %p330 = pneg %p81
      %p331 = pneg %p78
      %p332 = scmp.lt.s32.totalorder %s24, 1
      %s333 = scalar_select %p332, %s24, 1
      %s334 = smul.addr %s333, 2
      %s335 = smul.addr %s334, 4
      %s336 = scalar_lea.vmem %s2, %s335
      %p337 = pneg %p107
      %p338 = pneg %p104
      %p339 = pneg %p128
      %p340 = pneg %p125
      %p341 = pneg %p149
      %p342 = pneg %p146
      %p343 = pneg %p170
      %p344 = pneg %p167
      %p345 = pneg %p191
      %p346 = pneg %p188
      %p347 = pneg %p219
      %p348 = pneg %p216
      %s349 = smul.u32 2, %s25
      %p350 = scmp.lt.s32.totalorder %s24, 1
      %s351 = scalar_select %p350, %s24, 1
      %p352 = scmp.lt.s32.totalorder %s349, 1
      %s353 = scalar_select %p352, %s349, 1
      %s354 = smul.addr %s353, 2
      %s355 = smul.addr %s351, 4
      %s356 = sadd.s32 %s354, %s355
      %s357 = smul.addr %s356, 4
      %s358 = scalar_lea.vmem %s7, %s357
      %p359 = pneg %p247
      %p360 = pneg %p244
      %p361 = scmp.lt.s32.totalorder %s24, 1
      %s362 = scalar_select %p361, %s24, 1
      %p363 = scmp.lt.s32.totalorder %s25, 0
      %s364 = scalar_select %p363, %s25, 0
      %s365 = smul.addr %s364, 2
      %s366 = smul.addr %s362, 2
      %s367 = sadd.s32 %s365, %s366
      %s368 = smul.addr %s367, 8
      %s369 = scalar_lea.vmem %s8, %s368
      %p370 = scmp.lt.s32.totalorder %s24, 1
      %s371 = scalar_select %p370, %s24, 1
      %s372 = smul.addr %s371, 2
      %s373 = smul.addr %s372, 4
      %s374 = scalar_lea.vmem %s0, %s373
      %s375 = smul.u32 2, %s25
      %p376 = scmp.lt.s32.totalorder %s24, 1
      %s377 = scalar_select %p376, %s24, 1
      %p378 = scmp.lt.s32.totalorder %s375, 1
      %s379 = scalar_select %p378, %s375, 1
      %s380 = smul.addr %s377, 2
      %s381 = sadd.s32 %s379, %s380
      %s382 = smul.addr %s381, 4
      %s383 = scalar_lea.vmem %s1, %s382
      %s384 = smul.u32 2, %s25
      %p385 = scmp.lt.s32.totalorder %s24, 1
      %s386 = scalar_select %p385, %s24, 1
      %s387 = smul.addr %s386, 2
      %s388 = smul.addr %s387, 4
      %s389 = scalar_lea.vmem %s2, %s388
      %s390 = smul.u32 2, %s25
      %p391 = scmp.lt.s32.totalorder %s24, 1
      %s392 = scalar_select %p391, %s24, 1
      %p393 = scmp.lt.s32.totalorder %s390, 1
      %s394 = scalar_select %p393, %s390, 1
      %s395 = smul.addr %s394, 2
      %s396 = smul.addr %s392, 4
      %s397 = sadd.s32 %s395, %s396
      %s398 = smul.addr %s397, 4
      %s399 = scalar_lea.vmem %s7, %s398
      %s400 = smul.u32 2, %s25
      %p401 = scmp.lt.s32.totalorder %s24, 1
      %s402 = scalar_select %p401, %s24, 1
      %p403 = scmp.lt.s32.totalorder %s25, 0
      %s404 = scalar_select %p403, %s25, 0
      %s405 = smul.addr %s404, 2
      %s406 = smul.addr %s402, 2
      %s407 = sadd.s32 %s405, %s406
      %s408 = smul.addr %s407, 8
      %s409 = scalar_lea.vmem %s8, %s408
      %v411 = vld [vmem:[%s383] sm:$0xf]
      %v412 = vld [vmem:[%s383 + $0x4] sm:$0xf]
      %v413 = vunpack.c.l.bf16 %v411
      %v414 = vunpack.c.l.bf16 %v412
      %v415 = vld [vmem:[%s374 + $0x4] sm:$0x8]
      %v416 = vunpack.c.l.bf16 %v415
      %p417 = scmp.gt.s32.totalorder %s25, 0
      %s418 = scalar_select %p417, 1, 0
      %s419 = scvt.s32.f32 %s418
      %v420 = vstv %s419
      %v421 = vmul.f32 %v416, %v420
      %v422 = vld [vmem:[%s389] sm:$0x1]
      %v423 = vunpack.c.l.bf16 %v422
      %p424 = scmp.lt.s32.totalorder %s25, 0
      %s425 = scalar_select %p424, 1, 0
      %s426 = scvt.s32.f32 %s425
      %v427 = vstv %s426
      %v428 = vmul.f32 %v423, %v427
      %v430 = vrot.slane %v421, 7
      %vm434 = vcmask 1040384
      %v435 = vrot.slane %v413, 7
      %v436 = vrot.slane %v414, 7
      %v437 = vsel %vm434, %v435, %v436
      %v442 = vrot.slane %v428, 7
      %v444 = vsel %vm434, %v430, %v435
      %v445 = vsel %vm434, %v436, %v442
      %v446 = vpack.c.bf16 %v444, %v444
      %v447 = vpack.c.bf16 %v437, %v437
      %v448 = vpack.c.bf16 %v445, %v445
      %v449 = vld [vmem:[%s3] sm:$0xff]
      %v450 = vld [vmem:[%s3 + $0x8] sm:$0xff]
      %v451 = vld [vmem:[%s3 + $0x10] sm:$0xff]
      %v452 = vld [vmem:[%s3 + $0x18] sm:$0xff]
      %v453 = vld [vmem:[%s3 + $0x20] sm:$0xff]
      %v454 = vld [vmem:[%s3 + $0x28] sm:$0xff]
      %v455 = vld [vmem:[%s3 + $0x30] sm:$0xff]
      %v456 = vld [vmem:[%s3 + $0x38] sm:$0xff]
      %v457 = vld [vmem:[%s3 + $0x40] sm:$0xff]
      %s458 = scalar_lea.vmem %s3, 72
      %v459 = vld [vmem:[%s458] sm:$0xff]
      %v460 = vld [vmem:[%s458 + $0x8] sm:$0xff]
      %v461 = vld [vmem:[%s458 + $0x10] sm:$0xff]
      %v462 = vld [vmem:[%s458 + $0x18] sm:$0xff]
      %v463 = vld [vmem:[%s458 + $0x20] sm:$0xff]
      %v464 = vld [vmem:[%s458 + $0x28] sm:$0xff]
      %v465 = vld [vmem:[%s458 + $0x30] sm:$0xff]
      %v466 = vld [vmem:[%s458 + $0x38] sm:$0xff]
      %v467 = vld [vmem:[%s458 + $0x40] sm:$0xff]
      %v471 = vunpack.c.l.b16 %v446
      %v472 = vunpack.c.l.b16 %v447
      %v473 = vunpack.c.l.b16 %v448
      %v474 = vpack.c.b16 %v472, %v471
      %v475 = vpack.c.b16 %v473, %v473
      %vm476 = vsmask.f32 7424
      %v478 = vshrl.u32 %v474, 16
      %v480 = vshll.u32 %v474, 16
      %v482 = vrot.slane %v480, 1
      %v483 = vor.u32 %v478, %v482
      %v485 = vshll.u32 %v475, 16
      %v487 = vrot.slane %v485, 1
      %v488 = vsel %vm476, %v483, %v487
      %v498 = vunpack.c.l.b16 %v459
      %v499 = vunpack.c.h.b16 %v459
      %v500 = vunpack.c.l.b16 %v460
      %v501 = vunpack.c.h.b16 %v460
      %v502 = vunpack.c.l.b16 %v461
      %v503 = vunpack.c.h.b16 %v461
      %v504 = vunpack.c.l.b16 %v462
      %v505 = vunpack.c.h.b16 %v462
      %v506 = vunpack.c.l.b16 %v463
      %v507 = vunpack.c.h.b16 %v463
      %v508 = vunpack.c.l.b16 %v464
      %v509 = vunpack.c.h.b16 %v464
      %v510 = vunpack.c.l.b16 %v465
      %v511 = vunpack.c.h.b16 %v465
      %v512 = vunpack.c.l.b16 %v466
      %v513 = vunpack.c.h.b16 %v466
      %v514 = vunpack.c.l.b16 %v467
      %v515 = vunpack.c.h.b16 %v467
      %v516 = vpack.c.b16 %v500, %v498
      %v517 = vpack.c.b16 %v501, %v499
      %v518 = vpack.c.b16 %v504, %v502
      %v519 = vpack.c.b16 %v505, %v503
      %v520 = vpack.c.b16 %v508, %v506
      %v521 = vpack.c.b16 %v509, %v507
      %v522 = vpack.c.b16 %v512, %v510
      %v523 = vpack.c.b16 %v513, %v511
      %v524 = vpack.c.b16 %v514, %v514
      %v525 = vpack.c.b16 %v515, %v515
      %vm534 = vcmask 588800
      %v536 = vsel %vm534, %v488, 0
      %vm538 = vcmask 1043456
      %v540 = vsel %vm538, %v524, 0
      %v543 = vsel %vm538, %v525, 0
      %545 = vmatpush.bf16.msra.mxu0 0
      %546 = vmatpush.bf16.msra.mxu0 0
      %547 = vmatpush.bf16.msra.mxu0 0
      %548 = vmatpush.bf16.msra.mxu0 %v540
      %549 = vmatpush.bf16.msra.mxu0 %v522
      %550 = vmatpush.bf16.msra.mxu0 %v520
      %551 = vmatpush.bf16.msra.mxu0 %v518
      %552 = vmatpush.bf16.msra.mxu0 %v516
      %553 = vmatmul.bf16.gmra.mxu0 %v536
      %v554 = vpop.f32.mrf.mxu0
      %v555 = vadd.f32 0.0, %v554
      %v556 = vpop.f32.mrf.mxu0
      %v557 = vadd.f32 0.0, %v556
      %558 = vdwg.mxu0
      %559 = vmatpush.bf16.msra.mxu0 0
      %560 = vmatpush.bf16.msra.mxu0 0
      %561 = vmatpush.bf16.msra.mxu0 0
      %562 = vmatpush.bf16.msra.mxu0 %v543
      %563 = vmatpush.bf16.msra.mxu0 %v523
      %564 = vmatpush.bf16.msra.mxu0 %v521
      %565 = vmatpush.bf16.msra.mxu0 %v519
      %566 = vmatpush.bf16.msra.mxu0 %v517
      %567 = vmatmul.bf16.gmra.mxu0 %v536
      %v568 = vpop.f32.mrf.mxu0
      %v569 = vadd.f32 0.0, %v568
      %v570 = vpop.f32.mrf.mxu0
      %v571 = vadd.f32 0.0, %v570
      %572 = vdwg.mxu0
      %v582 = vunpack.c.l.b16 %v449
      %v583 = vunpack.c.h.b16 %v449
      %v584 = vunpack.c.l.b16 %v450
      %v585 = vunpack.c.h.b16 %v450
      %v586 = vunpack.c.l.b16 %v451
      %v587 = vunpack.c.h.b16 %v451
      %v588 = vunpack.c.l.b16 %v452
      %v589 = vunpack.c.h.b16 %v452
      %v590 = vunpack.c.l.b16 %v453
      %v591 = vunpack.c.h.b16 %v453
      %v592 = vunpack.c.l.b16 %v454
      %v593 = vunpack.c.h.b16 %v454
      %v594 = vunpack.c.l.b16 %v455
      %v595 = vunpack.c.h.b16 %v455
      %v596 = vunpack.c.l.b16 %v456
      %v597 = vunpack.c.h.b16 %v456
      %v598 = vunpack.c.l.b16 %v457
      %v599 = vunpack.c.h.b16 %v457
      %v600 = vpack.c.b16 %v584, %v582
      %v601 = vpack.c.b16 %v585, %v583
      %v602 = vpack.c.b16 %v588, %v586
      %v603 = vpack.c.b16 %v589, %v587
      %v604 = vpack.c.b16 %v592, %v590
      %v605 = vpack.c.b16 %v593, %v591
      %v606 = vpack.c.b16 %v596, %v594
      %v607 = vpack.c.b16 %v597, %v595
      %v608 = vpack.c.b16 %v598, %v598
      %v609 = vpack.c.b16 %v599, %v599
      %v618 = vsel %vm534, %v474, 0
      %v621 = vsel %vm538, %v608, 0
      %v624 = vsel %vm538, %v609, 0
      %626 = vmatpush.bf16.msra.mxu0 0
      %627 = vmatpush.bf16.msra.mxu0 0
      %628 = vmatpush.bf16.msra.mxu0 0
      %629 = vmatpush.bf16.msra.mxu0 %v621
      %630 = vmatpush.bf16.msra.mxu0 %v606
      %631 = vmatpush.bf16.msra.mxu0 %v604
      %632 = vmatpush.bf16.msra.mxu0 %v602
      %633 = vmatpush.bf16.msra.mxu0 %v600
      %634 = vmatmul.bf16.gmra.mxu0 %v618
      %v635 = vpop.f32.mrf.mxu0
      %v636 = vadd.f32 %v555, %v635
      %v637 = vpop.f32.mrf.mxu0
      %v638 = vadd.f32 %v557, %v637
      %639 = vdwg.mxu0
      %640 = vmatpush.bf16.msra.mxu0 0
      %641 = vmatpush.bf16.msra.mxu0 0
      %642 = vmatpush.bf16.msra.mxu0 0
      %643 = vmatpush.bf16.msra.mxu0 %v624
      %644 = vmatpush.bf16.msra.mxu0 %v607
      %645 = vmatpush.bf16.msra.mxu0 %v605
      %646 = vmatpush.bf16.msra.mxu0 %v603
      %647 = vmatpush.bf16.msra.mxu0 %v601
      %648 = vmatmul.bf16.gmra.mxu0 %v618
      %v649 = vpop.f32.mrf.mxu0
      %v650 = vadd.f32 %v569, %v649
      %v651 = vpop.f32.mrf.mxu0
      %v652 = vadd.f32 %v571, %v651
      %653 = vdwg.mxu0
      %s654 = scalar_lea.vmem %s3, 144
      %v655 = vld [vmem:[%s654] sm:$0xff]
      %v656 = vld [vmem:[%s654 + $0x8] sm:$0xff]
      %v657 = vld [vmem:[%s654 + $0x10] sm:$0xff]
      %v658 = vld [vmem:[%s654 + $0x18] sm:$0xff]
      %v659 = vld [vmem:[%s654 + $0x20] sm:$0xff]
      %v660 = vld [vmem:[%s654 + $0x28] sm:$0xff]
      %v661 = vld [vmem:[%s654 + $0x30] sm:$0xff]
      %v662 = vld [vmem:[%s654 + $0x38] sm:$0xff]
      %v663 = vld [vmem:[%s654 + $0x40] sm:$0xff]
      %vm664 = vcmask 1046528
      %v665 = vrot.slane %v474, 1
      %v666 = vrot.slane %v475, 1
      %v667 = vsel %vm664, %v665, %v666
      %v677 = vunpack.c.l.b16 %v655
      %v678 = vunpack.c.h.b16 %v655
      %v679 = vunpack.c.l.b16 %v656
      %v680 = vunpack.c.h.b16 %v656
      %v681 = vunpack.c.l.b16 %v657
      %v682 = vunpack.c.h.b16 %v657
      %v683 = vunpack.c.l.b16 %v658
      %v684 = vunpack.c.h.b16 %v658
      %v685 = vunpack.c.l.b16 %v659
      %v686 = vunpack.c.h.b16 %v659
      %v687 = vunpack.c.l.b16 %v660
      %v688 = vunpack.c.h.b16 %v660
      %v689 = vunpack.c.l.b16 %v661
      %v690 = vunpack.c.h.b16 %v661
      %v691 = vunpack.c.l.b16 %v662
      %v692 = vunpack.c.h.b16 %v662
      %v693 = vunpack.c.l.b16 %v663
      %v694 = vunpack.c.h.b16 %v663
      %v695 = vpack.c.b16 %v679, %v677
      %v696 = vpack.c.b16 %v680, %v678
      %v697 = vpack.c.b16 %v683, %v681
      %v698 = vpack.c.b16 %v684, %v682
      %v699 = vpack.c.b16 %v687, %v685
      %v700 = vpack.c.b16 %v688, %v686
      %v701 = vpack.c.b16 %v691, %v689
      %v702 = vpack.c.b16 %v692, %v690
      %v703 = vpack.c.b16 %v693, %v693
      %v704 = vpack.c.b16 %v694, %v694
      %v714 = vsel %vm534, %v667, 0
      %v717 = vsel %vm538, %v703, 0
      %v720 = vsel %vm538, %v704, 0
      %722 = vmatpush.bf16.msra.mxu0 0
      %723 = vmatpush.bf16.msra.mxu0 0
      %724 = vmatpush.bf16.msra.mxu0 0
      %725 = vmatpush.bf16.msra.mxu0 %v717
      %726 = vmatpush.bf16.msra.mxu0 %v701
      %727 = vmatpush.bf16.msra.mxu0 %v699
      %728 = vmatpush.bf16.msra.mxu0 %v697
      %729 = vmatpush.bf16.msra.mxu0 %v695
      %730 = vmatmul.bf16.gmra.mxu0 %v714
      %v731 = vpop.f32.mrf.mxu0
      %v732 = vadd.f32 0.0, %v731
      %v733 = vpop.f32.mrf.mxu0
      %v734 = vadd.f32 0.0, %v733
      %735 = vdwg.mxu0
      %736 = vmatpush.bf16.msra.mxu0 0
      %737 = vmatpush.bf16.msra.mxu0 0
      %738 = vmatpush.bf16.msra.mxu0 0
      %739 = vmatpush.bf16.msra.mxu0 %v720
      %740 = vmatpush.bf16.msra.mxu0 %v702
      %741 = vmatpush.bf16.msra.mxu0 %v700
      %742 = vmatpush.bf16.msra.mxu0 %v698
      %743 = vmatpush.bf16.msra.mxu0 %v696
      %744 = vmatmul.bf16.gmra.mxu0 %v714
      %v745 = vpop.f32.mrf.mxu0
      %v746 = vadd.f32 0.0, %v745
      %v747 = vpop.f32.mrf.mxu0
      %v748 = vadd.f32 0.0, %v747
      %749 = vdwg.mxu0
      %v750 = vadd.f32 %v636, %v732
      %v751 = vadd.f32 %v650, %v746
      %v752 = vadd.f32 %v638, %v734
      %v753 = vadd.f32 %v652, %v748
      %v754 = vld [vmem:[%s4] sm:$0x3]
      %v756 = vperm.slane %v754, 0
      %v757 = vperm.slane %v754, 1
      %v760 = vadd.f32 %v750, %v756
      %v761 = vadd.f32 %v751, %v757
      %v762 = vadd.f32 %v752, %v756
      %v763 = vadd.f32 %v753, %v757
      %v764 = vpack.c.bf16 %v761, %v760
      %v765 = vpack.c.bf16 %v763, %v762
      %vm766 = vcmask 130052
      %vm767 = vmor %vm766, %vm538
      %768 = vst.msk [vmem:[%s399] sm:$0xff] %vm767, %v764
      %769 = vst.msk [vmem:[%s399 + $0x8] sm:$0xff] %vm767, %v765
      %v770 = vld [vmem:[%s4] sm:$0x3]
      %v772 = vperm.slane %v770, 0
      %v773 = vperm.slane %v770, 1
      %v776 = vsub.f32 %v760, %v772
      %v777 = vsub.f32 %v761, %v773
      %v778 = vsub.f32 %v762, %v772
      %v779 = vsub.f32 %v763, %v773
      %v780 = vadd.f32 %v760, %v762
      %v781 = vrot.slane %v780, 4
      %v782 = vadd.f32 %v780, %v781
      %v783 = vrot.slane %v782, 2
      %v784 = vadd.f32 %v782, %v783
      %v785 = vrot.slane %v784, 1
      %v786 = vadd.f32 %v784, %v785
      %vm787 = vcmask 130048
      %v788 = vsel %vm787, %v761, 0.0
      %v789 = vsel %vm787, %v763, 0.0
      %v790 = vadd.f32 %v788, %v789
      %v791 = vrot.slane %v790, 4
      %v792 = vadd.f32 %v790, %v791
      %v793 = vrot.slane %v792, 2
      %v794 = vadd.f32 %v792, %v793
      %v795 = vrot.slane %v794, 1
      %v796 = vadd.f32 %v794, %v795
      %v797 = vmul.f32 %v776, %v776
      %v798 = vmul.f32 %v777, %v777
      %v799 = vmul.f32 %v778, %v778
      %v800 = vmul.f32 %v779, %v779
      %v801 = vadd.f32 %v797, %v799
      %v802 = vrot.slane %v801, 4
      %v803 = vadd.f32 %v801, %v802
      %v804 = vrot.slane %v803, 2
      %v805 = vadd.f32 %v803, %v804
      %v806 = vrot.slane %v805, 1
      %v807 = vadd.f32 %v805, %v806
      %v808 = vsel %vm787, %v798, 0.0
      %v809 = vsel %vm787, %v800, 0.0
      %v810 = vadd.f32 %v808, %v809
      %v811 = vrot.slane %v810, 4
      %v812 = vadd.f32 %v810, %v811
      %v813 = vrot.slane %v812, 2
      %v814 = vadd.f32 %v812, %v813
      %v815 = vrot.slane %v814, 1
      %v816 = vadd.f32 %v814, %v815
      %v817 = vsel %vm434, %v786, %v807
      %v818 = vsel %vm434, %v796, %v816
      %vm819 = vcmask 1041408
      %v820 = vsel %vm819, %v817, 0.0
      %v821 = vsel %vm819, %v818, 0.0
      %822 = vst [vmem:[%s409] sm:$0xff] %v820
      %823 = vst.msk [vmem:[%s409 + $0x8] sm:$0xff] %vm787, %v821
      %s824 = smul.u32 2, %s25
      %p825 = scmp.lt.s32.totalorder %s24, 1
      %s826 = scalar_select %p825, %s24, 1
      %p827 = scmp.lt.s32.totalorder %s824, 1
      %s828 = scalar_select %p827, %s824, 1
      %s829 = smul.addr %s828, 2
      %s830 = smul.addr %s826, 4
      %s831 = sadd.s32 %s829, %s830
      %s832 = smul.addr %s831, 4
      %s833 = scalar_lea.vmem %s7, %s832
      %p834 = scmp.lt.s32.totalorder %s24, 1
      %s835 = scalar_select %p834, %s24, 1
      %p836 = scmp.lt.s32.totalorder %s25, 0
      %s837 = scalar_select %p836, %s25, 0
      %s838 = smul.addr %s837, 2
      %s839 = smul.addr %s835, 2
      %s840 = sadd.s32 %s838, %s839
      %s841 = smul.addr %s840, 8
      %s842 = scalar_lea.vmem %s8, %s841
      // Predicated region
      $region49: #{convolution_forward.3} parent=47 // pred_check
        %p843 = pneg %p216
      $region50: #{convolution_forward.3} parent=47 // pred_check_branch
        %845 = sbr.rel (%p843) target = $region52
      $region51: #{convolution_forward.3} parent=47 // pred_region
        %s846 = smul.u32 2, %s25
      $region52: #{convolution_forward.3} parent=47 // pred_fallthru
        _
      // Predicated region
      $region53: #{convolution_forward.3} parent=47 // pred_check
        %p847 = pneg %p244
      $region54: #{convolution_forward.3} parent=47 // pred_check_branch
        %849 = sbr.rel (%p847) target = $region56
      $region55: #{convolution_forward.3} parent=47 // pred_region
        _
      $region56: #{convolution_forward.3} parent=47 // pred_fallthru
        _
    $region48: #{convolution_forward.3} parent=5 // pred_fallthru
      _
    %p850 = scmp.le.s32.totalorder 2, %s15
    // Predicated region
    $region57: #{convolution_forward.3} parent=5 // pred_check
      %p851 = pneg %p850
    $region58: #{convolution_forward.3} parent=5 // pred_check_branch
      %853 = sbr.rel (%p851) target = $region60
    $region59: #{convolution_forward.3} parent=5 // pred_region
      %s854 = ssub.s32 %s15, 2
      // Predicated region
      $region61: #{convolution_forward.3} parent=59 // pred_check
        %p855 = pneg %p222
      $region62: #{convolution_forward.3} parent=59 // pred_check_branch
        %857 = sbr.rel (%p855) target = $region64
      $region63: #{convolution_forward.3} parent=59 // pred_region
        %s858 = smul.u32 2, %s27
        %p859 = scmp.lt.s32.totalorder %s26, 1
        %s860 = scalar_select %p859, %s26, 1
        %p861 = scmp.lt.s32.totalorder %s858, 1
        %s862 = scalar_select %p861, %s858, 1
        %s863 = smul.addr %s862, 2
        %s864 = smul.addr %s860, 4
        %s865 = sadd.s32 %s863, %s864
        %s866 = smul.addr %s865, 4
        %s867 = scalar_lea.vmem %s7, %s866
      $region64: #{convolution_forward.3} parent=59 // pred_fallthru
        _
      // Predicated region
      $region65: #{convolution_forward.3} parent=59 // pred_check
        %p868 = pneg %p250
      $region66: #{convolution_forward.3} parent=59 // pred_check_branch
        %870 = sbr.rel (%p868) target = $region68
      $region67: #{convolution_forward.3} parent=59 // pred_region
        %p871 = scmp.lt.s32.totalorder %s26, 1
        %s872 = scalar_select %p871, %s26, 1
        %p873 = scmp.lt.s32.totalorder %s27, 0
        %s874 = scalar_select %p873, %s27, 0
        %s875 = smul.addr %s874, 2
        %s876 = smul.addr %s872, 2
        %s877 = sadd.s32 %s875, %s876
        %s878 = smul.addr %s877, 8
        %s879 = scalar_lea.vmem %s8, %s878
      $region68: #{convolution_forward.3} parent=59 // pred_fallthru
        _
    $region60: #{convolution_forward.3} parent=5 // pred_fallthru
      _
  $region6: #{convolution_forward.3} parent=0 // loop_footer
    %s19 = sadd.s32 1, %s15
  $region7: #{convolution_forward.3} parent=0 // loop_footer_branch
    %14 = sbr.rel target = $region3
  $region8: #{convolution_forward.3} parent=0 // loop_exit
    _

// kernel: squeeze.4
$region0: #{squeeze.4}
  %s0 = inlined_call_operand.vmem [shape: f32[144], index: 0, kind: input, shape index: {}]
  %s1 = inlined_call_operand.vmem [shape: f32[18,8], index: 1, kind: output, shape index: {}]
  $region1: #{squeeze.4} parent=0
    #allocation0 [shape = 'u8[4096]{0}', space=vmem, size = 0x1000, scoped, tag = 'scoped mem for input reshape']
    %s3 = ssub.s32 4, 1
    %v4 = vld [vmem:[%s0] sm:%s3]
    %5 = vst [vmem:[#allocation0] sm:%s3] %v4
    %v6 = vld [vmem:[#allocation0] sm:$0x3]
    %vm7 = vcmask 64512
    %8 = vst.msk [vmem:[%s1] ss:$16 sm:$0x3] %vm7, %v6
    %v9 = vld [vmem:[#allocation0] sm:$0x3]
    %10 = vrot.lane.b32.xlu0 %v9, 120
    %v11 = vpop.permute.xlu0 %10
    %vm12 = vcmask 64512
    %s13 = scalar_lea.vmem %s1, 1
    %14 = vst.msk [vmem:[%s13] ss:$16 sm:$0x3] %vm12, %v11
    %v15 = vld [vmem:[#allocation0] sm:$0x1]
    %16 = vrot.lane.b32.xlu0 %v15, 112
    %v17 = vpop.permute.xlu0 %16
    %vm18 = vcmask 64512
    %s19 = scalar_lea.vmem %s1, 2
    %20 = vst.msk [vmem:[%s19] sm:$0x1] %vm18, %v17
    %v21 = vld [vmem:[#allocation0] sm:$0x1]
    %22 = vrot.lane.b32.xlu0 %v21, 104
    %v23 = vpop.permute.xlu0 %22
    %vm24 = vcmask 64512
    %s25 = scalar_lea.vmem %s1, 3
    %26 = vst.msk [vmem:[%s25] sm:$0x1] %vm24, %v23
    %v27 = vld [vmem:[#allocation0] sm:$0x1]
    %28 = vrot.lane.b32.xlu0 %v27, 96
    %v29 = vpop.permute.xlu0 %28
    %vm30 = vcmask 64512
    %s31 = scalar_lea.vmem %s1, 4
    %32 = vst.msk [vmem:[%s31] sm:$0x1] %vm30, %v29
    %v33 = vld [vmem:[#allocation0] sm:$0x1]
    %34 = vrot.lane.b32.xlu0 %v33, 88
    %v35 = vpop.permute.xlu0 %34
    %vm36 = vcmask 64512
    %s37 = scalar_lea.vmem %s1, 5
    %38 = vst.msk [vmem:[%s37] sm:$0x1] %vm36, %v35
    %v39 = vld [vmem:[#allocation0] sm:$0x1]
    %40 = vrot.lane.b32.xlu0 %v39, 80
    %v41 = vpop.permute.xlu0 %40
    %vm42 = vcmask 64512
    %s43 = scalar_lea.vmem %s1, 6
    %44 = vst.msk [vmem:[%s43] sm:$0x1] %vm42, %v41
    %v45 = vld [vmem:[#allocation0] sm:$0x1]
    %46 = vrot.lane.b32.xlu0 %v45, 72
    %v47 = vpop.permute.xlu0 %46
    %vm48 = vcmask 64512
    %s49 = scalar_lea.vmem %s1, 7
    %50 = vst.msk [vmem:[%s49] sm:$0x1] %vm48, %v47
    %v51 = vld [vmem:[#allocation0] sm:$0x1]
    %52 = vrot.lane.b32.xlu0 %v51, 64
    %v53 = vpop.permute.xlu0 %52
    %vm54 = vcmask 64512
    %s55 = scalar_lea.vmem %s1, 8
    %56 = vst.msk [vmem:[%s55] sm:$0x1] %vm54, %v53
    %v57 = vld [vmem:[#allocation0] sm:$0x1]
    %58 = vrot.lane.b32.xlu0 %v57, 56
    %v59 = vpop.permute.xlu0 %58
    %vm60 = vcmask 64512
    %s61 = scalar_lea.vmem %s1, 9
    %62 = vst.msk [vmem:[%s61] sm:$0x1] %vm60, %v59
    %v63 = vld [vmem:[#allocation0] sm:$0x1]
    %64 = vrot.lane.b32.xlu0 %v63, 48
    %v65 = vpop.permute.xlu0 %64
    %vm66 = vcmask 64512
    %s67 = scalar_lea.vmem %s1, 10
    %68 = vst.msk [vmem:[%s67] sm:$0x1] %vm66, %v65
    %v69 = vld [vmem:[#allocation0] sm:$0x1]
    %70 = vrot.lane.b32.xlu0 %v69, 40
    %v71 = vpop.permute.xlu0 %70
    %vm72 = vcmask 64512
    %s73 = scalar_lea.vmem %s1, 11
    %74 = vst.msk [vmem:[%s73] sm:$0x1] %vm72, %v71
    %v75 = vld [vmem:[#allocation0] sm:$0x1]
    %76 = vrot.lane.b32.xlu0 %v75, 32
    %v77 = vpop.permute.xlu0 %76
    %vm78 = vcmask 64512
    %s79 = scalar_lea.vmem %s1, 12
    %80 = vst.msk [vmem:[%s79] sm:$0x1] %vm78, %v77
    %v81 = vld [vmem:[#allocation0] sm:$0x1]
    %82 = vrot.lane.b32.xlu0 %v81, 24
    %v83 = vpop.permute.xlu0 %82
    %vm84 = vcmask 64512
    %s85 = scalar_lea.vmem %s1, 13
    %86 = vst.msk [vmem:[%s85] sm:$0x1] %vm84, %v83
    %v87 = vld [vmem:[#allocation0] sm:$0x1]
    %88 = vrot.lane.b32.xlu0 %v87, 16
    %v89 = vpop.permute.xlu0 %88
    %vm90 = vcmask 64512
    %s91 = scalar_lea.vmem %s1, 14
    %92 = vst.msk [vmem:[%s91] sm:$0x1] %vm90, %v89
    %v93 = vld [vmem:[#allocation0] sm:$0x1]
    %94 = vrot.lane.b32.xlu0 %v93, 8
    %v95 = vpop.permute.xlu0 %94
    %vm96 = vcmask 64512
    %s97 = scalar_lea.vmem %s1, 15
    %98 = vst.msk [vmem:[%s97] sm:$0x1] %vm96, %v95

// kernel: tile.42
$region0: #{tile.42}
  #allocation0 [shape = 's32[1]{0}', space=sflag, size = 0x4, scoped, tag = 'scoped memory for tile.42']
  %s0 = inlined_call_operand.vmem [shape: f32[8], index: 0, kind: input, shape index: {}]
  %s1 = inlined_call_operand.vmem [shape: f32[18,8], index: 1, kind: output, shape index: {}]
  // Predicated region
  $region2: #{tile.42} parent=0 // pred_check
    _
  $region3: #{tile.42} parent=0 // pred_check_branch
    %3 = sbr.rel (0) target = $region5
  $region4: #{tile.42} parent=0 // pred_region
    _
  $region5: #{tile.42} parent=0 // pred_fallthru
    _
  %v4 = vld [vmem:[%s0] ss:$0 sm:$0xff]
  %5 = vst [vmem:[%s1] sm:$0xff] %v4
  %s6 = scalar_lea.vmem %s1, 8
  %7 = vst [vmem:[%s6] sm:$0xff] %v4
  %s8 = scalar_lea.vmem %s1, 16
  %9 = vst [vmem:[%s8] sm:$0xff] %v4

// kernel: convolution_forward.4
$region0: #{convolution_forward.4}
  #allocation0 [shape = 'u32[]', space=smem, size = 0x4, offset = 0x4, fixed_abs, tag = 'smem constant byte address 0x4 - core index']
  #allocation1 [shape = 'u32[72,128]{1,0:T(1,128)}', space=vmem, size = 0x9000, scoped, tag = 'internal scratch']
  %s0 = inlined_call_operand.vmem [shape: bf16[2,16,144], index: 0, kind: input, shape index: {}, may-alias: {0,1,2}]
  %s1 = inlined_call_operand.vmem [shape: bf16[2,16,144], index: 1, kind: input, shape index: {}, may-alias: {0,1,2}]
  %s2 = inlined_call_operand.vmem [shape: bf16[2,16,144], index: 2, kind: input, shape index: {}, may-alias: {0,1,2}]
  %s3 = inlined_call_operand.vmem [shape: bf16[3,144,144], index: 3, kind: input, shape index: {}]
  %s4 = inlined_call_operand.vmem [shape: f32[1,144], index: 4, kind: input, shape index: {}]
  %s5 = inlined_call_operand.vmem [shape: f32[1,144], index: 5, kind: input, shape index: {}]
  %s6 = inlined_call_operand.vmem [shape: f32[1,144], index: 6, kind: input, shape index: {}]
  %s7 = inlined_call_operand.vmem [shape: bf16[2,16,144], index: 7, kind: output, shape index: {0}]
  %s8 = inlined_call_operand.vmem [shape: f32[2,1,8,144], index: 8, kind: output, shape index: {1}]
  %9 = xla_tuple %s7, %s8
  %s10 = sld [smem:[#allocation0]]
  $region69: #{convolution_forward.4} parent=0
    _
  %s12 = ssub.s32 1, %s10
  %s13 = scalar_select 0, %s12, %s10
  loop: start=0, step=1, limit=4
  $region2: #{convolution_forward.4} parent=0 // loop_pre_header
    _
  $region3: #{convolution_forward.4} parent=0 // loop_header
    %s15 = sphi 0, %s19
    %p16 = scmp.ge.s32.totalorder %s15, 4
    %s22 = sphi 0, %s34
    %s23 = sphi 0, %s30
    %s24 = sphi 0, %s22
    %s25 = sphi 0, %s23
    %s26 = sphi 0, %s24
    %s27 = sphi 0, %s25
    %s37 = sphi 0, %s39
    %s40 = sphi 0, %s37
    %s41 = sphi 0, %s40
    %s57 = sphi 0, %s41
    %s65 = sphi 0, %s67
    %s68 = sphi 0, %s65
    %s69 = sphi 0, %s68
    %s85 = sphi 0, %s69
    %s91 = sphi 0, %s93
    %s94 = sphi 0, %s91
    %s95 = sphi 0, %s94
    %s111 = sphi 0, %s95
    %s115 = sphi 0, %s115
    %s117 = sphi 0, %s115
    %s118 = sphi 0, %s117
    %s132 = sphi 0, %s118
    %s136 = sphi 0, %s136
    %s138 = sphi 0, %s136
    %s139 = sphi 0, %s138
    %s153 = sphi 0, %s139
    %s157 = sphi 0, %s157
    %s159 = sphi 0, %s157
    %s160 = sphi 0, %s159
    %s174 = sphi 0, %s160
    %s178 = sphi 0, %s178
    %s180 = sphi 0, %s178
    %s181 = sphi 0, %s180
    %s195 = sphi 0, %s181
    %s203 = sphi 0, %s205
    %s206 = sphi 0, %s203
    %s207 = sphi 0, %s206
    %s223 = sphi 0, %s207
    %s231 = sphi 0, %s233
    %s234 = sphi 0, %s231
    %s235 = sphi 0, %s234
    %s251 = sphi 0, %s235
  $region4: #{convolution_forward.4} parent=0 // loop_header_branch
    %18 = sbr.rel (%p16) target = $region8
  $region5: #{convolution_forward.4} parent=0 // loop_body
    %s20 = ssub.s32 %s15, 1
    %s21 = ssub.s32 %s15, 2
    %s28 = sadd.s32 1, %s23
    %p29 = scmp.ge.s32.totalorder %s28, 1
    %s30 = scalar_select %p29, 0, %s28
    %s31 = sadd.s32 1, %s22
    %s32 = scalar_select %p29, %s31, %s22
    %p33 = scmp.ge.s32.totalorder %s32, 2
    %s34 = scalar_select %p33, 0, %s32
    %s35 = ssub.s32 %s22, %s34
    %p36 = scmp.eq.s32.totalorder %s35, 0
    %s38 = sadd.s32 %s37, 1
    %s39 = scalar_select %p36, %s37, %s38
    %p42 = pneg %p36
    %p43 = scmp.eq.s32.totalorder %s15, 1
    %p44 = por %p42, %p43
    %p45 = scmp.ne.s32.totalorder %s37, %s40
    %p46 = scmp.eq.s32.totalorder %s15, 0
    %p47 = por %p45, %p46
    %p48 = scmp.ne.s32.totalorder %s37, %s40
    %p49 = scmp.eq.s32.totalorder %s20, 1
    %p50 = por %p48, %p49
    %p51 = scmp.ne.s32.totalorder %s40, %s41
    %p52 = scmp.eq.s32.totalorder %s20, 0
    %p53 = por %p51, %p52
    %p54 = scmp.ne.s32.totalorder %s40, %s41
    %p55 = scmp.eq.s32.totalorder %s21, 1
    %p56 = por %p54, %p55
    %p58 = scmp.ne.s32.totalorder %s41, %s57
    %p59 = scmp.eq.s32.totalorder %s21, 0
    %p60 = por %p58, %p59
    %s61 = ssub.s32 %s22, %s34
    %s62 = ssub.s32 %s23, %s30
    %s63 = sor.u32 %s61, %s62
    %p64 = scmp.eq.s32.totalorder %s63, 0
    %s66 = sadd.s32 %s65, 1
    %s67 = scalar_select %p64, %s65, %s66
    %p70 = pneg %p64
    %p71 = scmp.eq.s32.totalorder %s15, 1
    %p72 = por %p70, %p71
    %p73 = scmp.ne.s32.totalorder %s65, %s68
    %p74 = scmp.eq.s32.totalorder %s15, 0
    %p75 = por %p73, %p74
    %p76 = scmp.ne.s32.totalorder %s65, %s68
    %p77 = scmp.eq.s32.totalorder %s20, 1
    %p78 = por %p76, %p77
    %p79 = scmp.ne.s32.totalorder %s68, %s69
    %p80 = scmp.eq.s32.totalorder %s20, 0
    %p81 = por %p79, %p80
    %p82 = scmp.ne.s32.totalorder %s68, %s69
    %p83 = scmp.eq.s32.totalorder %s21, 1
    %p84 = por %p82, %p83
    %p86 = scmp.ne.s32.totalorder %s69, %s85
    %p87 = scmp.eq.s32.totalorder %s21, 0
    %p88 = por %p86, %p87
    %s89 = ssub.s32 %s22, %s34
    %p90 = scmp.eq.s32.totalorder %s89, 0
    %s92 = sadd.s32 %s91, 1
    %s93 = scalar_select %p90, %s91, %s92
    %p96 = pneg %p90
    %p97 = scmp.eq.s32.totalorder %s15, 1
    %p98 = por %p96, %p97
    %p99 = scmp.ne.s32.totalorder %s91, %s94
    %p100 = scmp.eq.s32.totalorder %s15, 0
    %p101 = por %p99, %p100
    %p102 = scmp.ne.s32.totalorder %s91, %s94
    %p103 = scmp.eq.s32.totalorder %s20, 1
    %p104 = por %p102, %p103
    %p105 = scmp.ne.s32.totalorder %s94, %s95
    %p106 = scmp.eq.s32.totalorder %s20, 0
    %p107 = por %p105, %p106
    %p108 = scmp.ne.s32.totalorder %s94, %s95
    %p109 = scmp.eq.s32.totalorder %s21, 1
    %p110 = por %p108, %p109
    %p112 = scmp.ne.s32.totalorder %s95, %s111
    %p113 = scmp.eq.s32.totalorder %s21, 0
    %p114 = por %p112, %p113
    %s116 = sadd.s32 %s115, 1
    %p119 = scmp.eq.s32.totalorder %s15, 1
    %p120 = scmp.ne.s32.totalorder %s115, %s117
    %p121 = scmp.eq.s32.totalorder %s15, 0
    %p122 = por %p120, %p121
    %p123 = scmp.ne.s32.totalorder %s115, %s117
    %p124 = scmp.eq.s32.totalorder %s20, 1
    %p125 = por %p123, %p124
    %p126 = scmp.ne.s32.totalorder %s117, %s118
    %p127 = scmp.eq.s32.totalorder %s20, 0
    %p128 = por %p126, %p127
    %p129 = scmp.ne.s32.totalorder %s117, %s118
    %p130 = scmp.eq.s32.totalorder %s21, 1
    %p131 = por %p129, %p130
    %p133 = scmp.ne.s32.totalorder %s118, %s132
    %p134 = scmp.eq.s32.totalorder %s21, 0
    %p135 = por %p133, %p134
    %s137 = sadd.s32 %s136, 1
    %p140 = scmp.eq.s32.totalorder %s15, 1
    %p141 = scmp.ne.s32.totalorder %s136, %s138
    %p142 = scmp.eq.s32.totalorder %s15, 0
    %p143 = por %p141, %p142
    %p144 = scmp.ne.s32.totalorder %s136, %s138
    %p145 = scmp.eq.s32.totalorder %s20, 1
    %p146 = por %p144, %p145
    %p147 = scmp.ne.s32.totalorder %s138, %s139
    %p148 = scmp.eq.s32.totalorder %s20, 0
    %p149 = por %p147, %p148
    %p150 = scmp.ne.s32.totalorder %s138, %s139
    %p151 = scmp.eq.s32.totalorder %s21, 1
    %p152 = por %p150, %p151
    %p154 = scmp.ne.s32.totalorder %s139, %s153
    %p155 = scmp.eq.s32.totalorder %s21, 0
    %p156 = por %p154, %p155
    %s158 = sadd.s32 %s157, 1
    %p161 = scmp.eq.s32.totalorder %s15, 1
    %p162 = scmp.ne.s32.totalorder %s157, %s159
    %p163 = scmp.eq.s32.totalorder %s15, 0
    %p164 = por %p162, %p163
    %p165 = scmp.ne.s32.totalorder %s157, %s159
    %p166 = scmp.eq.s32.totalorder %s20, 1
    %p167 = por %p165, %p166
    %p168 = scmp.ne.s32.totalorder %s159, %s160
    %p169 = scmp.eq.s32.totalorder %s20, 0
    %p170 = por %p168, %p169
    %p171 = scmp.ne.s32.totalorder %s159, %s160
    %p172 = scmp.eq.s32.totalorder %s21, 1
    %p173 = por %p171, %p172
    %p175 = scmp.ne.s32.totalorder %s160, %s174
    %p176 = scmp.eq.s32.totalorder %s21, 0
    %p177 = por %p175, %p176
    %s179 = sadd.s32 %s178, 1
    %p182 = scmp.eq.s32.totalorder %s15, 1
    %p183 = scmp.ne.s32.totalorder %s178, %s180
    %p184 = scmp.eq.s32.totalorder %s15, 0
    %p185 = por %p183, %p184
    %p186 = scmp.ne.s32.totalorder %s178, %s180
    %p187 = scmp.eq.s32.totalorder %s20, 1
    %p188 = por %p186, %p187
    %p189 = scmp.ne.s32.totalorder %s180, %s181
    %p190 = scmp.eq.s32.totalorder %s20, 0
    %p191 = por %p189, %p190
    %p192 = scmp.ne.s32.totalorder %s180, %s181
    %p193 = scmp.eq.s32.totalorder %s21, 1
    %p194 = por %p192, %p193
    %p196 = scmp.ne.s32.totalorder %s181, %s195
    %p197 = scmp.eq.s32.totalorder %s21, 0
    %p198 = por %p196, %p197
    %s199 = ssub.s32 %s22, %s34
    %s200 = ssub.s32 %s23, %s30
    %s201 = sor.u32 %s199, %s200
    %p202 = scmp.eq.s32.totalorder %s201, 0
    %s204 = sadd.s32 %s203, 1
    %s205 = scalar_select %p202, %s203, %s204
    %p208 = pneg %p202
    %p209 = scmp.eq.s32.totalorder %s15, 1
    %p210 = por %p208, %p209
    %p211 = scmp.ne.s32.totalorder %s203, %s206
    %p212 = scmp.eq.s32.totalorder %s15, 0
    %p213 = por %p211, %p212
    %p214 = scmp.ne.s32.totalorder %s203, %s206
    %p215 = scmp.eq.s32.totalorder %s20, 1
    %p216 = por %p214, %p215
    %p217 = scmp.ne.s32.totalorder %s206, %s207
    %p218 = scmp.eq.s32.totalorder %s20, 0
    %p219 = por %p217, %p218
    %p220 = scmp.ne.s32.totalorder %s206, %s207
    %p221 = scmp.eq.s32.totalorder %s21, 1
    %p222 = por %p220, %p221
    %p224 = scmp.ne.s32.totalorder %s207, %s223
    %p225 = scmp.eq.s32.totalorder %s21, 0
    %p226 = por %p224, %p225
    %s227 = ssub.s32 %s22, %s34
    %s228 = ssub.s32 %s23, %s30
    %s229 = sor.u32 %s227, %s228
    %p230 = scmp.eq.s32.totalorder %s229, 0
    %s232 = sadd.s32 %s231, 1
    %s233 = scalar_select %p230, %s231, %s232
    %p236 = pneg %p230
    %p237 = scmp.eq.s32.totalorder %s15, 1
    %p238 = por %p236, %p237
    %p239 = scmp.ne.s32.totalorder %s231, %s234
    %p240 = scmp.eq.s32.totalorder %s15, 0
    %p241 = por %p239, %p240
    %p242 = scmp.ne.s32.totalorder %s231, %s234
    %p243 = scmp.eq.s32.totalorder %s20, 1
    %p244 = por %p242, %p243
    %p245 = scmp.ne.s32.totalorder %s234, %s235
    %p246 = scmp.eq.s32.totalorder %s20, 0
    %p247 = por %p245, %p246
    %p248 = scmp.ne.s32.totalorder %s234, %s235
    %p249 = scmp.eq.s32.totalorder %s21, 1
    %p250 = por %p248, %p249
    %p252 = scmp.ne.s32.totalorder %s235, %s251
    %p253 = scmp.eq.s32.totalorder %s21, 0
    %p254 = por %p252, %p253
    %p255 = scmp.le.s32.totalorder 1, %s15
    %p256 = scmp.lt.s32.totalorder %s15, 3
    %p257 = pnand %p255, %p256
    %p258 = pneg %p257
    // Predicated region
    $region9: #{convolution_forward.4} parent=5 // pred_check
      _
    $region10: #{convolution_forward.4} parent=5 // pred_check_branch
      %260 = sbr.rel (%p257) target = $region12
    $region11: #{convolution_forward.4} parent=5 // pred_region
      %s261 = ssub.s32 %s15, 1
      // Predicated region
      $region13: #{convolution_forward.4} parent=11 // pred_check
        %p262 = pneg %p128
      $region14: #{convolution_forward.4} parent=11 // pred_check_branch
        %264 = sbr.rel (%p262) target = $region16
      $region15: #{convolution_forward.4} parent=11 // pred_region
        _
      $region16: #{convolution_forward.4} parent=11 // pred_fallthru
        _
      // Predicated region
      $region17: #{convolution_forward.4} parent=11 // pred_check
        %p265 = pneg %p149
      $region18: #{convolution_forward.4} parent=11 // pred_check_branch
        %267 = sbr.rel (%p265) target = $region20
      $region19: #{convolution_forward.4} parent=11 // pred_region
        _
      $region20: #{convolution_forward.4} parent=11 // pred_fallthru
        _
      // Predicated region
      $region21: #{convolution_forward.4} parent=11 // pred_check
        %p268 = pneg %p170
      $region22: #{convolution_forward.4} parent=11 // pred_check_branch
        %270 = sbr.rel (%p268) target = $region24
      $region23: #{convolution_forward.4} parent=11 // pred_region
        _
      $region24: #{convolution_forward.4} parent=11 // pred_fallthru
        _
      // Predicated region
      $region25: #{convolution_forward.4} parent=11 // pred_check
        %p271 = pneg %p191
      $region26: #{convolution_forward.4} parent=11 // pred_check_branch
        %273 = sbr.rel (%p271) target = $region28
      $region27: #{convolution_forward.4} parent=11 // pred_region
        _
      $region28: #{convolution_forward.4} parent=11 // pred_fallthru
        _
    $region12: #{convolution_forward.4} parent=5 // pred_fallthru
      _
    %p274 = scmp.lt.s32.totalorder %s15, 2
    // Predicated region
    $region29: #{convolution_forward.4} parent=5 // pred_check
      %p275 = pneg %p274
    $region30: #{convolution_forward.4} parent=5 // pred_check_branch
      %277 = sbr.rel (%p275) target = $region32
    $region31: #{convolution_forward.4} parent=5 // pred_region
      // Predicated region
      $region33: #{convolution_forward.4} parent=31 // pred_check
        %p278 = pneg %p47
      $region34: #{convolution_forward.4} parent=31 // pred_check_branch
        %280 = sbr.rel (%p278) target = $region36
      $region35: #{convolution_forward.4} parent=31 // pred_region
        %p281 = scmp.lt.s32.totalorder %s22, 1
        %s282 = scalar_select %p281, %s22, 1
        %s283 = smul.addr %s282, 4
        %s284 = smul.addr %s283, 4
        %s285 = scalar_lea.vmem %s0, %s284
      $region36: #{convolution_forward.4} parent=31 // pred_fallthru
        _
      // Predicated region
      $region37: #{convolution_forward.4} parent=31 // pred_check
        %p286 = pneg %p75
      $region38: #{convolution_forward.4} parent=31 // pred_check_branch
        %288 = sbr.rel (%p286) target = $region40
      $region39: #{convolution_forward.4} parent=31 // pred_region
        %s289 = smul.u32 2, %s23
        %p290 = scmp.lt.s32.totalorder %s22, 1
        %s291 = scalar_select %p290, %s22, 1
        %p292 = scmp.lt.s32.totalorder %s289, 1
        %s293 = scalar_select %p292, %s289, 1
        %s294 = smul.addr %s293, 2
        %s295 = smul.addr %s291, 4
        %s296 = sadd.s32 %s294, %s295
        %s297 = smul.addr %s296, 4
        %s298 = scalar_lea.vmem %s1, %s297
        %s299 = smul.u32 2, %s23
      $region40: #{convolution_forward.4} parent=31 // pred_fallthru
        _
      // Predicated region
      $region41: #{convolution_forward.4} parent=31 // pred_check
        %p300 = pneg %p101
      $region42: #{convolution_forward.4} parent=31 // pred_check_branch
        %302 = sbr.rel (%p300) target = $region44
      $region43: #{convolution_forward.4} parent=31 // pred_region
        %p303 = scmp.lt.s32.totalorder %s22, 1
        %s304 = scalar_select %p303, %s22, 1
        %s305 = smul.addr %s304, 4
        %s306 = smul.addr %s305, 4
        %s307 = scalar_lea.vmem %s2, %s306
      $region44: #{convolution_forward.4} parent=31 // pred_fallthru
        _
    $region32: #{convolution_forward.4} parent=5 // pred_fallthru
      _
    %p308 = scmp.le.s32.totalorder 1, %s15
    %p309 = scmp.lt.s32.totalorder %s15, 3
    %p310 = pnand %p308, %p309
    %p311 = pneg %p310
    // Predicated region
    $region45: #{convolution_forward.4} parent=5 // pred_check
      _
    $region46: #{convolution_forward.4} parent=5 // pred_check_branch
      %313 = sbr.rel (%p310) target = $region48
    $region47: #{convolution_forward.4} parent=5 // pred_region
      %s314 = ssub.s32 %s15, 1
      %p315 = scmp.lt.s32.totalorder %s24, 1
      %s316 = scalar_select %p315, %s24, 1
      %s317 = smul.addr %s316, 4
      %s318 = smul.addr %s317, 4
      %s319 = scalar_lea.vmem %s0, %s318
      %p320 = pneg %p53
      %p321 = pneg %p50
      %s322 = smul.u32 2, %s25
      %p323 = scmp.lt.s32.totalorder %s24, 1
      %s324 = scalar_select %p323, %s24, 1
      %p325 = scmp.lt.s32.totalorder %s322, 1
      %s326 = scalar_select %p325, %s322, 1
      %s327 = smul.addr %s326, 2
      %s328 = smul.addr %s324, 4
      %s329 = sadd.s32 %s327, %s328
      %s330 = smul.addr %s329, 4
      %s331 = scalar_lea.vmem %s1, %s330
      %p332 = pneg %p81
      %p333 = pneg %p78
      %p334 = scmp.lt.s32.totalorder %s24, 1
      %s335 = scalar_select %p334, %s24, 1
      %s336 = smul.addr %s335, 4
      %s337 = smul.addr %s336, 4
      %s338 = scalar_lea.vmem %s2, %s337
      %p339 = pneg %p107
      %p340 = pneg %p104
      %p341 = pneg %p128
      %p342 = pneg %p125
      %p343 = pneg %p149
      %p344 = pneg %p146
      %p345 = pneg %p170
      %p346 = pneg %p167
      %p347 = pneg %p191
      %p348 = pneg %p188
      %p349 = pneg %p219
      %p350 = pneg %p216
      %s351 = smul.u32 2, %s25
      %p352 = scmp.lt.s32.totalorder %s24, 1
      %s353 = scalar_select %p352, %s24, 1
      %p354 = scmp.lt.s32.totalorder %s351, 1
      %s355 = scalar_select %p354, %s351, 1
      %s356 = smul.addr %s355, 2
      %s357 = smul.addr %s353, 4
      %s358 = sadd.s32 %s356, %s357
      %s359 = smul.addr %s358, 4
      %s360 = scalar_lea.vmem %s7, %s359
      %p361 = pneg %p247
      %p362 = pneg %p244
      %p363 = scmp.lt.s32.totalorder %s24, 1
      %s364 = scalar_select %p363, %s24, 1
      %p365 = scmp.lt.s32.totalorder %s25, 0
      %s366 = scalar_select %p365, %s25, 0
      %s367 = smul.addr %s366, 2
      %s368 = smul.addr %s364, 2
      %s369 = sadd.s32 %s367, %s368
      %s370 = smul.addr %s369, 8
      %s371 = scalar_lea.vmem %s8, %s370
      %p372 = scmp.lt.s32.totalorder %s24, 1
      %s373 = scalar_select %p372, %s24, 1
      %s374 = smul.addr %s373, 4
      %s375 = smul.addr %s374, 4
      %s376 = scalar_lea.vmem %s0, %s375
      %s377 = smul.u32 2, %s25
      %p378 = scmp.lt.s32.totalorder %s24, 1
      %s379 = scalar_select %p378, %s24, 1
      %p380 = scmp.lt.s32.totalorder %s377, 1
      %s381 = scalar_select %p380, %s377, 1
      %s382 = smul.addr %s381, 2
      %s383 = smul.addr %s379, 4
      %s384 = sadd.s32 %s382, %s383
      %s385 = smul.addr %s384, 4
      %s386 = scalar_lea.vmem %s1, %s385
      %s387 = smul.u32 2, %s25
      %p388 = scmp.lt.s32.totalorder %s24, 1
      %s389 = scalar_select %p388, %s24, 1
      %s390 = smul.addr %s389, 4
      %s391 = smul.addr %s390, 4
      %s392 = scalar_lea.vmem %s2, %s391
      %s393 = smul.u32 2, %s25
      %p394 = scmp.lt.s32.totalorder %s24, 1
      %s395 = scalar_select %p394, %s24, 1
      %p396 = scmp.lt.s32.totalorder %s393, 1
      %s397 = scalar_select %p396, %s393, 1
      %s398 = smul.addr %s397, 2
      %s399 = smul.addr %s395, 4
      %s400 = sadd.s32 %s398, %s399
      %s401 = smul.addr %s400, 4
      %s402 = scalar_lea.vmem %s7, %s401
      %s403 = smul.u32 2, %s25
      %p404 = scmp.lt.s32.totalorder %s24, 1
      %s405 = scalar_select %p404, %s24, 1
      %p406 = scmp.lt.s32.totalorder %s25, 0
      %s407 = scalar_select %p406, %s25, 0
      %s408 = smul.addr %s407, 2
      %s409 = smul.addr %s405, 2
      %s410 = sadd.s32 %s408, %s409
      %s411 = smul.addr %s410, 8
      %s412 = scalar_lea.vmem %s8, %s411
      %v414 = vld [vmem:[%s386] sm:$0xff]
      %v415 = vld [vmem:[%s386 + $0x8] sm:$0xff]
      %v416 = vunpack.c.l.bf16 %v414
      %v417 = vunpack.c.h.bf16 %v414
      %v418 = vunpack.c.l.bf16 %v415
      %v419 = vunpack.c.h.bf16 %v415
      %v420 = vld [vmem:[%s5] sm:$0x3]
      %v422 = vperm.slane %v420, 0
      %v423 = vperm.slane %v420, 1
      %v426 = vmul.f32 %v416, %v422
      %v427 = vmul.f32 %v417, %v423
      %v428 = vmul.f32 %v418, %v422
      %v429 = vmul.f32 %v419, %v423
      %v430 = vld [vmem:[%s6] sm:$0x3]
      %v432 = vperm.slane %v430, 0
      %v433 = vperm.slane %v430, 1
      %v436 = vadd.f32 %v426, %v432
      %v437 = vadd.f32 %v427, %v433
      %v438 = vadd.f32 %v428, %v432
      %v439 = vadd.f32 %v429, %v433
      %v440 = vmax.f32 %v436, 0.0
      %v441 = vmax.f32 %v437, 0.0
      %v442 = vmax.f32 %v438, 0.0
      %v443 = vmax.f32 %v439, 0.0
      %v444 = vld [vmem:[%s376 + $0x8] sm:$0x88]
      %v445 = vunpack.c.l.bf16 %v444
      %v446 = vunpack.c.h.bf16 %v444
      %v447 = vmul.f32 %v445, %v422
      %v448 = vmul.f32 %v446, %v423
      %v449 = vadd.f32 %v447, %v432
      %v450 = vadd.f32 %v448, %v433
      %v451 = vmax.f32 %v449, 0.0
      %v452 = vmax.f32 %v450, 0.0
      %p453 = scmp.gt.s32.totalorder %s25, 0
      %s454 = scalar_select %p453, 1, 0
      %s455 = scvt.s32.f32 %s454
      %v456 = vstv %s455
      %v457 = vmul.f32 %v451, %v456
      %v458 = vmul.f32 %v452, %v456
      %v459 = vld [vmem:[%s392] sm:$0x11]
      %v460 = vunpack.c.l.bf16 %v459
      %v461 = vunpack.c.h.bf16 %v459
      %v462 = vmul.f32 %v460, %v422
      %v463 = vmul.f32 %v461, %v423
      %v464 = vadd.f32 %v462, %v432
      %v465 = vadd.f32 %v463, %v433
      %v466 = vmax.f32 %v464, 0.0
      %v467 = vmax.f32 %v465, 0.0
      %p468 = scmp.lt.s32.totalorder %s25, 0
      %s469 = scalar_select %p468, 1, 0
      %s470 = scvt.s32.f32 %s469
      %v471 = vstv %s470
      %v472 = vmul.f32 %v466, %v471
      %v473 = vmul.f32 %v467, %v471
      %v476 = vrot.slane %v457, 7
      %v477 = vrot.slane %v458, 7
      %vm484 = vcmask 1040384
      %v485 = vrot.slane %v440, 7
      %v486 = vrot.slane %v441, 7
      %v487 = vrot.slane %v442, 7
      %v488 = vsel %vm484, %v485, %v487
      %v489 = vrot.slane %v443, 7
      %v490 = vsel %vm484, %v486, %v489
      %v499 = vrot.slane %v472, 7
      %v500 = vrot.slane %v473, 7
      %v503 = vsel %vm484, %v476, %v485
      %v504 = vsel %vm484, %v477, %v486
      %v505 = vsel %vm484, %v487, %v499
      %v506 = vsel %vm484, %v489, %v500
      %v507 = vpack.c.bf16 %v504, %v503
      %v508 = vpack.c.bf16 %v490, %v488
      %v509 = vpack.c.bf16 %v506, %v505
      %v510 = vld [vmem:[%s3] sm:$0xff]
      %v511 = vld [vmem:[%s3 + $0x8] sm:$0xff]
      %v512 = vld [vmem:[%s3 + $0x10] sm:$0xff]
      %v513 = vld [vmem:[%s3 + $0x18] sm:$0xff]
      %v514 = vld [vmem:[%s3 + $0x20] sm:$0xff]
      %v515 = vld [vmem:[%s3 + $0x28] sm:$0xff]
      %v516 = vld [vmem:[%s3 + $0x30] sm:$0xff]
      %v517 = vld [vmem:[%s3 + $0x38] sm:$0xff]
      %v518 = vld [vmem:[%s3 + $0x40] sm:$0xff]
      %v519 = vld [vmem:[%s3 + $0x48] sm:$0xff]
      %v520 = vld [vmem:[%s3 + $0x50] sm:$0xff]
      %v521 = vld [vmem:[%s3 + $0x58] sm:$0xff]
      %v522 = vld [vmem:[%s3 + $0x60] sm:$0xff]
      %v523 = vld [vmem:[%s3 + $0x68] sm:$0xff]
      %v524 = vld [vmem:[%s3 + $0x70] sm:$0xff]
      %v525 = vld [vmem:[%s3 + $0x78] sm:$0xff]
      %v526 = vld [vmem:[%s3 + $0x80] sm:$0xff]
      %v527 = vld [vmem:[%s3 + $0x88] sm:$0xff]
      %s528 = scalar_lea.vmem %s3, 144
      %v529 = vld [vmem:[%s528] sm:$0xff]
      %v530 = vld [vmem:[%s528 + $0x8] sm:$0xff]
      %v531 = vld [vmem:[%s528 + $0x10] sm:$0xff]
      %v532 = vld [vmem:[%s528 + $0x18] sm:$0xff]
      %v533 = vld [vmem:[%s528 + $0x20] sm:$0xff]
      %v534 = vld [vmem:[%s528 + $0x28] sm:$0xff]
      %v535 = vld [vmem:[%s528 + $0x30] sm:$0xff]
      %v536 = vld [vmem:[%s528 + $0x38] sm:$0xff]
      %v537 = vld [vmem:[%s528 + $0x40] sm:$0xff]
      %v538 = vld [vmem:[%s528 + $0x48] sm:$0xff]
      %v539 = vld [vmem:[%s528 + $0x50] sm:$0xff]
      %v540 = vld [vmem:[%s528 + $0x58] sm:$0xff]
      %v541 = vld [vmem:[%s528 + $0x60] sm:$0xff]
      %v542 = vld [vmem:[%s528 + $0x68] sm:$0xff]
      %v543 = vld [vmem:[%s528 + $0x70] sm:$0xff]
      %v544 = vld [vmem:[%s528 + $0x78] sm:$0xff]
      %v545 = vld [vmem:[%s528 + $0x80] sm:$0xff]
      %v546 = vld [vmem:[%s528 + $0x88] sm:$0xff]
      %v550 = vunpack.c.l.b16 %v507
      %v551 = vunpack.c.h.b16 %v507
      %v552 = vunpack.c.l.b16 %v508
      %v553 = vunpack.c.h.b16 %v508
      %v554 = vunpack.c.l.b16 %v509
      %v555 = vunpack.c.h.b16 %v509
      %v556 = vpack.c.b16 %v552, %v550
      %v557 = vpack.c.b16 %v553, %v551
      %v558 = vpack.c.b16 %v554, %v554
      %v559 = vpack.c.b16 %v555, %v555
      %vm560 = vsmask.f32 7424
      %v562 = vshrl.u32 %v556, 16
      %v564 = vshll.u32 %v556, 16
      %v566 = vrot.slane %v564, 1
      %v567 = vor.u32 %v562, %v566
      %v569 = vshll.u32 %v558, 16
      %v571 = vrot.slane %v569, 1
      %v572 = vsel %vm560, %v567, %v571
      %v574 = vshrl.u32 %v557, 16
      %v576 = vshll.u32 %v557, 16
      %v578 = vrot.slane %v576, 1
      %v579 = vor.u32 %v574, %v578
      %v581 = vshll.u32 %v559, 16
      %v583 = vrot.slane %v581, 1
      %v584 = vsel %vm560, %v579, %v583
      %v604 = vunpack.c.l.b16 %v529
      %v605 = vunpack.c.h.b16 %v529
      %v606 = vunpack.c.l.b16 %v530
      %v607 = vunpack.c.h.b16 %v530
      %v608 = vunpack.c.l.b16 %v531
      %v609 = vunpack.c.h.b16 %v531
      %v610 = vunpack.c.l.b16 %v532
      %v611 = vunpack.c.h.b16 %v532
      %v612 = vunpack.c.l.b16 %v533
      %v613 = vunpack.c.h.b16 %v533
      %v614 = vunpack.c.l.b16 %v534
      %v615 = vunpack.c.h.b16 %v534
      %v616 = vunpack.c.l.b16 %v535
      %v617 = vunpack.c.h.b16 %v535
      %v618 = vunpack.c.l.b16 %v536
      %v619 = vunpack.c.h.b16 %v536
      %v620 = vunpack.c.l.b16 %v537
      %v621 = vunpack.c.h.b16 %v537
      %v622 = vunpack.c.l.b16 %v538
      %v623 = vunpack.c.h.b16 %v538
      %v624 = vunpack.c.l.b16 %v539
      %v625 = vunpack.c.h.b16 %v539
      %v626 = vunpack.c.l.b16 %v540
      %v627 = vunpack.c.h.b16 %v540
      %v628 = vunpack.c.l.b16 %v541
      %v629 = vunpack.c.h.b16 %v541
      %v630 = vunpack.c.l.b16 %v542
      %v631 = vunpack.c.h.b16 %v542
      %v632 = vunpack.c.l.b16 %v543
      %v633 = vunpack.c.h.b16 %v543
      %v634 = vunpack.c.l.b16 %v544
      %v635 = vunpack.c.h.b16 %v544
      %v636 = vunpack.c.l.b16 %v545
      %v637 = vunpack.c.h.b16 %v545
      %v638 = vunpack.c.l.b16 %v546
      %v639 = vunpack.c.h.b16 %v546
      %v640 = vpack.c.b16 %v606, %v604
      %v641 = vpack.c.b16 %v607, %v605
      %v642 = vpack.c.b16 %v610, %v608
      %v643 = vpack.c.b16 %v611, %v609
      %v644 = vpack.c.b16 %v614, %v612
      %v645 = vpack.c.b16 %v615, %v613
      %v646 = vpack.c.b16 %v618, %v616
      %v647 = vpack.c.b16 %v619, %v617
      %v648 = vpack.c.b16 %v622, %v620
      %v649 = vpack.c.b16 %v623, %v621
      %v650 = vpack.c.b16 %v626, %v624
      %v651 = vpack.c.b16 %v627, %v625
      %v652 = vpack.c.b16 %v630, %v628
      %v653 = vpack.c.b16 %v631, %v629
      %v654 = vpack.c.b16 %v634, %v632
      %v655 = vpack.c.b16 %v635, %v633
      %v656 = vpack.c.b16 %v638, %v636
      %v657 = vpack.c.b16 %v639, %v637
      %vm676 = vcmask 130048
      %v678 = vsel %vm676, %v584, 0
      %680 = vmatpush.bf16.msra.mxu0 %v654
      %681 = vmatpush.bf16.msra.mxu0 %v652
      %682 = vmatpush.bf16.msra.mxu0 %v650
      %683 = vmatpush.bf16.msra.mxu0 %v648
      %684 = vmatpush.bf16.msra.mxu0 %v646
      %685 = vmatpush.bf16.msra.mxu0 %v644
      %686 = vmatpush.bf16.msra.mxu0 %v642
      %687 = vmatpush.bf16.msra.mxu0 %v640
      %688 = vmatmul.bf16.gmra.mxu0 %v572
      %v689 = vpop.f32.mrf.mxu0
      %v690 = vadd.f32 0.0, %v689
      %v691 = vpop.f32.mrf.mxu0
      %v692 = vadd.f32 0.0, %v691
      %693 = vdwg.mxu0
      %694 = vmatpush.bf16.msra.mxu0 0
      %695 = vmatpush.bf16.msra.mxu0 0
      %696 = vmatpush.bf16.msra.mxu0 0
      %697 = vmatpush.bf16.msra.mxu0 0
      %698 = vmatpush.bf16.msra.mxu0 0
      %699 = vmatpush.bf16.msra.mxu0 0
      %700 = vmatpush.bf16.msra.mxu0 0
      %701 = vmatpush.bf16.msra.mxu0 %v656
      %702 = vmatmul.bf16.gmra.mxu0 %v678
      %v703 = vpop.f32.mrf.mxu0
      %v704 = vadd.f32 %v690, %v703
      %v705 = vpop.f32.mrf.mxu0
      %v706 = vadd.f32 %v692, %v705
      %707 = vdwg.mxu0
      %708 = vmatpush.bf16.msra.mxu0 %v655
      %709 = vmatpush.bf16.msra.mxu0 %v653
      %710 = vmatpush.bf16.msra.mxu0 %v651
      %711 = vmatpush.bf16.msra.mxu0 %v649
      %712 = vmatpush.bf16.msra.mxu0 %v647
      %713 = vmatpush.bf16.msra.mxu0 %v645
      %714 = vmatpush.bf16.msra.mxu0 %v643
      %715 = vmatpush.bf16.msra.mxu0 %v641
      %716 = vmatmul.bf16.gmra.mxu0 %v572
      %v717 = vpop.f32.mrf.mxu0
      %v718 = vadd.f32 0.0, %v717
      %v719 = vpop.f32.mrf.mxu0
      %v720 = vadd.f32 0.0, %v719
      %721 = vdwg.mxu0
      %722 = vmatpush.bf16.msra.mxu0 0
      %723 = vmatpush.bf16.msra.mxu0 0
      %724 = vmatpush.bf16.msra.mxu0 0
      %725 = vmatpush.bf16.msra.mxu0 0
      %726 = vmatpush.bf16.msra.mxu0 0
      %727 = vmatpush.bf16.msra.mxu0 0
      %728 = vmatpush.bf16.msra.mxu0 0
      %729 = vmatpush.bf16.msra.mxu0 %v657
      %730 = vmatmul.bf16.gmra.mxu0 %v678
      %v731 = vpop.f32.mrf.mxu0
      %v732 = vadd.f32 %v718, %v731
      %v733 = vpop.f32.mrf.mxu0
      %v734 = vadd.f32 %v720, %v733
      %735 = vdwg.mxu0
      %v755 = vunpack.c.l.b16 %v510
      %v756 = vunpack.c.h.b16 %v510
      %v757 = vunpack.c.l.b16 %v511
      %v758 = vunpack.c.h.b16 %v511
      %v759 = vunpack.c.l.b16 %v512
      %v760 = vunpack.c.h.b16 %v512
      %v761 = vunpack.c.l.b16 %v513
      %v762 = vunpack.c.h.b16 %v513
      %v763 = vunpack.c.l.b16 %v514
      %v764 = vunpack.c.h.b16 %v514
      %v765 = vunpack.c.l.b16 %v515
      %v766 = vunpack.c.h.b16 %v515
      %v767 = vunpack.c.l.b16 %v516
      %v768 = vunpack.c.h.b16 %v516
      %v769 = vunpack.c.l.b16 %v517
      %v770 = vunpack.c.h.b16 %v517
      %v771 = vunpack.c.l.b16 %v518
      %v772 = vunpack.c.h.b16 %v518
      %v773 = vunpack.c.l.b16 %v519
      %v774 = vunpack.c.h.b16 %v519
      %v775 = vunpack.c.l.b16 %v520
      %v776 = vunpack.c.h.b16 %v520
      %v777 = vunpack.c.l.b16 %v521
      %v778 = vunpack.c.h.b16 %v521
      %v779 = vunpack.c.l.b16 %v522
      %v780 = vunpack.c.h.b16 %v522
      %v781 = vunpack.c.l.b16 %v523
      %v782 = vunpack.c.h.b16 %v523
      %v783 = vunpack.c.l.b16 %v524
      %v784 = vunpack.c.h.b16 %v524
      %v785 = vunpack.c.l.b16 %v525
      %v786 = vunpack.c.h.b16 %v525
      %v787 = vunpack.c.l.b16 %v526
      %v788 = vunpack.c.h.b16 %v526
      %v789 = vunpack.c.l.b16 %v527
      %v790 = vunpack.c.h.b16 %v527
      %v791 = vpack.c.b16 %v757, %v755
      %v792 = vpack.c.b16 %v758, %v756
      %v793 = vpack.c.b16 %v761, %v759
      %v794 = vpack.c.b16 %v762, %v760
      %v795 = vpack.c.b16 %v765, %v763
      %v796 = vpack.c.b16 %v766, %v764
      %v797 = vpack.c.b16 %v769, %v767
      %v798 = vpack.c.b16 %v770, %v768
      %v799 = vpack.c.b16 %v773, %v771
      %v800 = vpack.c.b16 %v774, %v772
      %v801 = vpack.c.b16 %v777, %v775
      %v802 = vpack.c.b16 %v778, %v776
      %v803 = vpack.c.b16 %v781, %v779
      %v804 = vpack.c.b16 %v782, %v780
      %v805 = vpack.c.b16 %v785, %v783
      %v806 = vpack.c.b16 %v786, %v784
      %v807 = vpack.c.b16 %v789, %v787
      %v808 = vpack.c.b16 %v790, %v788
      %v827 = vsel %vm676, %v557, 0
      %829 = vmatpush.bf16.msra.mxu0 %v805
      %830 = vmatpush.bf16.msra.mxu0 %v803
      %831 = vmatpush.bf16.msra.mxu0 %v801
      %832 = vmatpush.bf16.msra.mxu0 %v799
      %833 = vmatpush.bf16.msra.mxu0 %v797
      %834 = vmatpush.bf16.msra.mxu0 %v795
      %835 = vmatpush.bf16.msra.mxu0 %v793
      %836 = vmatpush.bf16.msra.mxu0 %v791
      %837 = vmatmul.bf16.gmra.mxu0 %v556
      %v838 = vpop.f32.mrf.mxu0
      %v839 = vadd.f32 %v704, %v838
      %v840 = vpop.f32.mrf.mxu0
      %v841 = vadd.f32 %v706, %v840
      %842 = vdwg.mxu0
      %843 = vmatpush.bf16.msra.mxu0 0
      %844 = vmatpush.bf16.msra.mxu0 0
      %845 = vmatpush.bf16.msra.mxu0 0
      %846 = vmatpush.bf16.msra.mxu0 0
      %847 = vmatpush.bf16.msra.mxu0 0
      %848 = vmatpush.bf16.msra.mxu0 0
      %849 = vmatpush.bf16.msra.mxu0 0
      %850 = vmatpush.bf16.msra.mxu0 %v807
      %851 = vmatmul.bf16.gmra.mxu0 %v827
      %v852 = vpop.f32.mrf.mxu0
      %v853 = vadd.f32 %v839, %v852
      %v854 = vpop.f32.mrf.mxu0
      %v855 = vadd.f32 %v841, %v854
      %856 = vdwg.mxu0
      %857 = vmatpush.bf16.msra.mxu0 %v806
      %858 = vmatpush.bf16.msra.mxu0 %v804
      %859 = vmatpush.bf16.msra.mxu0 %v802
      %860 = vmatpush.bf16.msra.mxu0 %v800
      %861 = vmatpush.bf16.msra.mxu0 %v798
      %862 = vmatpush.bf16.msra.mxu0 %v796
      %863 = vmatpush.bf16.msra.mxu0 %v794
      %864 = vmatpush.bf16.msra.mxu0 %v792
      %865 = vmatmul.bf16.gmra.mxu0 %v556
      %v866 = vpop.f32.mrf.mxu0
      %v867 = vadd.f32 %v732, %v866
      %v868 = vpop.f32.mrf.mxu0
      %v869 = vadd.f32 %v734, %v868
      %870 = vdwg.mxu0
      %871 = vmatpush.bf16.msra.mxu0 0
      %872 = vmatpush.bf16.msra.mxu0 0
      %873 = vmatpush.bf16.msra.mxu0 0
      %874 = vmatpush.bf16.msra.mxu0 0
      %875 = vmatpush.bf16.msra.mxu0 0
      %876 = vmatpush.bf16.msra.mxu0 0
      %877 = vmatpush.bf16.msra.mxu0 0
      %878 = vmatpush.bf16.msra.mxu0 %v808
      %879 = vmatmul.bf16.gmra.mxu0 %v827
      %v880 = vpop.f32.mrf.mxu0
      %v881 = vadd.f32 %v867, %v880
      %v882 = vpop.f32.mrf.mxu0
      %v883 = vadd.f32 %v869, %v882
      %884 = vdwg.mxu0
      %s885 = scalar_lea.vmem %s3, 288
      %v886 = vld [vmem:[%s885] sm:$0xff]
      %v887 = vld [vmem:[%s885 + $0x8] sm:$0xff]
      %v888 = vld [vmem:[%s885 + $0x10] sm:$0xff]
      %v889 = vld [vmem:[%s885 + $0x18] sm:$0xff]
      %v890 = vld [vmem:[%s885 + $0x20] sm:$0xff]
      %v891 = vld [vmem:[%s885 + $0x28] sm:$0xff]
      %v892 = vld [vmem:[%s885 + $0x30] sm:$0xff]
      %v893 = vld [vmem:[%s885 + $0x38] sm:$0xff]
      %v894 = vld [vmem:[%s885 + $0x40] sm:$0xff]
      %v895 = vld [vmem:[%s885 + $0x48] sm:$0xff]
      %v896 = vld [vmem:[%s885 + $0x50] sm:$0xff]
      %v897 = vld [vmem:[%s885 + $0x58] sm:$0xff]
      %v898 = vld [vmem:[%s885 + $0x60] sm:$0xff]
      %v899 = vld [vmem:[%s885 + $0x68] sm:$0xff]
      %v900 = vld [vmem:[%s885 + $0x70] sm:$0xff]
      %v901 = vld [vmem:[%s885 + $0x78] sm:$0xff]
      %v902 = vld [vmem:[%s885 + $0x80] sm:$0xff]
      %v903 = vld [vmem:[%s885 + $0x88] sm:$0xff]
      %vm904 = vcmask 1046528
      %v905 = vrot.slane %v556, 1
      %v906 = vrot.slane %v558, 1
      %v907 = vsel %vm904, %v905, %v906
      %v908 = vrot.slane %v557, 1
      %v909 = vrot.slane %v559, 1
      %v910 = vsel %vm904, %v908, %v909
      %v930 = vunpack.c.l.b16 %v886
      %v931 = vunpack.c.h.b16 %v886
      %v932 = vunpack.c.l.b16 %v887
      %v933 = vunpack.c.h.b16 %v887
      %v934 = vunpack.c.l.b16 %v888
      %v935 = vunpack.c.h.b16 %v888
      %v936 = vunpack.c.l.b16 %v889
      %v937 = vunpack.c.h.b16 %v889
      %v938 = vunpack.c.l.b16 %v890
      %v939 = vunpack.c.h.b16 %v890
      %v940 = vunpack.c.l.b16 %v891
      %v941 = vunpack.c.h.b16 %v891
      %v942 = vunpack.c.l.b16 %v892
      %v943 = vunpack.c.h.b16 %v892
      %v944 = vunpack.c.l.b16 %v893
      %v945 = vunpack.c.h.b16 %v893
      %v946 = vunpack.c.l.b16 %v894
      %v947 = vunpack.c.h.b16 %v894
      %v948 = vunpack.c.l.b16 %v895
      %v949 = vunpack.c.h.b16 %v895
      %v950 = vunpack.c.l.b16 %v896
      %v951 = vunpack.c.h.b16 %v896
      %v952 = vunpack.c.l.b16 %v897
      %v953 = vunpack.c.h.b16 %v897
      %v954 = vunpack.c.l.b16 %v898
      %v955 = vunpack.c.h.b16 %v898
      %v956 = vunpack.c.l.b16 %v899
      %v957 = vunpack.c.h.b16 %v899
      %v958 = vunpack.c.l.b16 %v900
      %v959 = vunpack.c.h.b16 %v900
      %v960 = vunpack.c.l.b16 %v901
      %v961 = vunpack.c.h.b16 %v901
      %v962 = vunpack.c.l.b16 %v902
      %v963 = vunpack.c.h.b16 %v902
      %v964 = vunpack.c.l.b16 %v903
      %v965 = vunpack.c.h.b16 %v903
      %v966 = vpack.c.b16 %v932, %v930
      %v967 = vpack.c.b16 %v933, %v931
      %v968 = vpack.c.b16 %v936, %v934
      %v969 = vpack.c.b16 %v937, %v935
      %v970 = vpack.c.b16 %v940, %v938
      %v971 = vpack.c.b16 %v941, %v939
      %v972 = vpack.c.b16 %v944, %v942
      %v973 = vpack.c.b16 %v945, %v943
      %v974 = vpack.c.b16 %v948, %v946
      %v975 = vpack.c.b16 %v949, %v947
      %v976 = vpack.c.b16 %v952, %v950
      %v977 = vpack.c.b16 %v953, %v951
      %v978 = vpack.c.b16 %v956, %v954
      %v979 = vpack.c.b16 %v957, %v955
      %v980 = vpack.c.b16 %v960, %v958
      %v981 = vpack.c.b16 %v961, %v959
      %v982 = vpack.c.b16 %v964, %v962
      %v983 = vpack.c.b16 %v965, %v963
      %v1003 = vsel %vm676, %v910, 0
      %1005 = vmatpush.bf16.msra.mxu0 %v980
      %1006 = vmatpush.bf16.msra.mxu0 %v978
      %1007 = vmatpush.bf16.msra.mxu0 %v976
      %1008 = vmatpush.bf16.msra.mxu0 %v974
      %1009 = vmatpush.bf16.msra.mxu0 %v972
      %1010 = vmatpush.bf16.msra.mxu0 %v970
      %1011 = vmatpush.bf16.msra.mxu0 %v968
      %1012 = vmatpush.bf16.msra.mxu0 %v966
      %1013 = vmatmul.bf16.gmra.mxu0 %v907
      %v1014 = vpop.f32.mrf.mxu0
      %v1015 = vadd.f32 0.0, %v1014
      %v1016 = vpop.f32.mrf.mxu0
      %v1017 = vadd.f32 0.0, %v1016
      %1018 = vdwg.mxu0
      %1019 = vmatpush.bf16.msra.mxu0 0
      %1020 = vmatpush.bf16.msra.mxu0 0
      %1021 = vmatpush.bf16.msra.mxu0 0
      %1022 = vmatpush.bf16.msra.mxu0 0
      %1023 = vmatpush.bf16.msra.mxu0 0
      %1024 = vmatpush.bf16.msra.mxu0 0
      %1025 = vmatpush.bf16.msra.mxu0 0
      %1026 = vmatpush.bf16.msra.mxu0 %v982
      %1027 = vmatmul.bf16.gmra.mxu0 %v1003
      %v1028 = vpop.f32.mrf.mxu0
      %v1029 = vadd.f32 %v1015, %v1028
      %v1030 = vpop.f32.mrf.mxu0
      %v1031 = vadd.f32 %v1017, %v1030
      %1032 = vdwg.mxu0
      %1033 = vmatpush.bf16.msra.mxu0 %v981
      %1034 = vmatpush.bf16.msra.mxu0 %v979
      %1035 = vmatpush.bf16.msra.mxu0 %v977
      %1036 = vmatpush.bf16.msra.mxu0 %v975
      %1037 = vmatpush.bf16.msra.mxu0 %v973
      %1038 = vmatpush.bf16.msra.mxu0 %v971
      %1039 = vmatpush.bf16.msra.mxu0 %v969
      %1040 = vmatpush.bf16.msra.mxu0 %v967
      %1041 = vmatmul.bf16.gmra.mxu0 %v907
      %v1042 = vpop.f32.mrf.mxu0
      %v1043 = vadd.f32 0.0, %v1042
      %v1044 = vpop.f32.mrf.mxu0
      %v1045 = vadd.f32 0.0, %v1044
      %1046 = vdwg.mxu0
      %1047 = vmatpush.bf16.msra.mxu0 0
      %1048 = vmatpush.bf16.msra.mxu0 0
      %1049 = vmatpush.bf16.msra.mxu0 0
      %1050 = vmatpush.bf16.msra.mxu0 0
      %1051 = vmatpush.bf16.msra.mxu0 0
      %1052 = vmatpush.bf16.msra.mxu0 0
      %1053 = vmatpush.bf16.msra.mxu0 0
      %1054 = vmatpush.bf16.msra.mxu0 %v983
      %1055 = vmatmul.bf16.gmra.mxu0 %v1003
      %v1056 = vpop.f32.mrf.mxu0
      %v1057 = vadd.f32 %v1043, %v1056
      %v1058 = vpop.f32.mrf.mxu0
      %v1059 = vadd.f32 %v1045, %v1058
      %1060 = vdwg.mxu0
      %v1061 = vadd.f32 %v853, %v1029
      %v1062 = vadd.f32 %v881, %v1057
      %v1063 = vadd.f32 %v855, %v1031
      %v1064 = vadd.f32 %v883, %v1059
      %v1065 = vld [vmem:[%s4] sm:$0x3]
      %v1067 = vperm.slane %v1065, 0
      %v1068 = vperm.slane %v1065, 1
      %v1071 = vadd.f32 %v1061, %v1067
      %v1072 = vadd.f32 %v1062, %v1068
      %v1073 = vadd.f32 %v1063, %v1067
      %v1074 = vadd.f32 %v1064, %v1068
      %v1075 = vpack.c.bf16 %v1072, %v1071
      %v1076 = vpack.c.bf16 %v1074, %v1073
      %vm1077 = vcmask 1043456
      %vm1078 = vcmask 130052
      %vm1079 = vmor %vm1078, %vm1077
      %1080 = vst.msk [vmem:[%s402] sm:$0xff] %vm1079, %v1075
      %1081 = vst.msk [vmem:[%s402 + $0x8] sm:$0xff] %vm1079, %v1076
      %v1082 = vld [vmem:[%s4] sm:$0x3]
      %v1084 = vperm.slane %v1082, 0
      %v1085 = vperm.slane %v1082, 1
      %v1088 = vsub.f32 %v1071, %v1084
      %v1089 = vsub.f32 %v1072, %v1085
      %v1090 = vsub.f32 %v1073, %v1084
      %v1091 = vsub.f32 %v1074, %v1085
      %v1092 = vadd.f32 %v1071, %v1073
      %v1093 = vrot.slane %v1092, 4
      %v1094 = vadd.f32 %v1092, %v1093
      %v1095 = vrot.slane %v1094, 2
      %v1096 = vadd.f32 %v1094, %v1095
      %v1097 = vrot.slane %v1096, 1
      %v1098 = vadd.f32 %v1096, %v1097
      %v1099 = vsel %vm676, %v1072, 0.0
      %v1100 = vsel %vm676, %v1074, 0.0
      %v1101 = vadd.f32 %v1099, %v1100
      %v1102 = vrot.slane %v1101, 4
      %v1103 = vadd.f32 %v1101, %v1102
      %v1104 = vrot.slane %v1103, 2
      %v1105 = vadd.f32 %v1103, %v1104
      %v1106 = vrot.slane %v1105, 1
      %v1107 = vadd.f32 %v1105, %v1106
      %v1108 = vmul.f32 %v1088, %v1088
      %v1109 = vmul.f32 %v1089, %v1089
      %v1110 = vmul.f32 %v1090, %v1090
      %v1111 = vmul.f32 %v1091, %v1091
      %v1112 = vadd.f32 %v1108, %v1110
      %v1113 = vrot.slane %v1112, 4
      %v1114 = vadd.f32 %v1112, %v1113
      %v1115 = vrot.slane %v1114, 2
      %v1116 = vadd.f32 %v1114, %v1115
      %v1117 = vrot.slane %v1116, 1
      %v1118 = vadd.f32 %v1116, %v1117
      %v1119 = vsel %vm676, %v1109, 0.0
      %v1120 = vsel %vm676, %v1111, 0.0
      %v1121 = vadd.f32 %v1119, %v1120
      %v1122 = vrot.slane %v1121, 4
      %v1123 = vadd.f32 %v1121, %v1122
      %v1124 = vrot.slane %v1123, 2
      %v1125 = vadd.f32 %v1123, %v1124
      %v1126 = vrot.slane %v1125, 1
      %v1127 = vadd.f32 %v1125, %v1126
      %v1128 = vsel %vm484, %v1098, %v1118
      %v1129 = vsel %vm484, %v1107, %v1127
      %vm1130 = vcmask 1041408
      %v1131 = vsel %vm1130, %v1128, 0.0
      %v1132 = vsel %vm1130, %v1129, 0.0
      %1133 = vst [vmem:[%s412] sm:$0xff] %v1131
      %1134 = vst.msk [vmem:[%s412 + $0x8] sm:$0xff] %vm676, %v1132
      %s1135 = smul.u32 2, %s25
      %p1136 = scmp.lt.s32.totalorder %s24, 1
      %s1137 = scalar_select %p1136, %s24, 1
      %p1138 = scmp.lt.s32.totalorder %s1135, 1
      %s1139 = scalar_select %p1138, %s1135, 1
      %s1140 = smul.addr %s1139, 2
      %s1141 = smul.addr %s1137, 4
      %s1142 = sadd.s32 %s1140, %s1141
      %s1143 = smul.addr %s1142, 4
      %s1144 = scalar_lea.vmem %s7, %s1143
      %p1145 = scmp.lt.s32.totalorder %s24, 1
      %s1146 = scalar_select %p1145, %s24, 1
      %p1147 = scmp.lt.s32.totalorder %s25, 0
      %s1148 = scalar_select %p1147, %s25, 0
      %s1149 = smul.addr %s1148, 2
      %s1150 = smul.addr %s1146, 2
      %s1151 = sadd.s32 %s1149, %s1150
      %s1152 = smul.addr %s1151, 8
      %s1153 = scalar_lea.vmem %s8, %s1152
      // Predicated region
      $region49: #{convolution_forward.4} parent=47 // pred_check
        %p1154 = pneg %p216
      $region50: #{convolution_forward.4} parent=47 // pred_check_branch
        %1156 = sbr.rel (%p1154) target = $region52
      $region51: #{convolution_forward.4} parent=47 // pred_region
        %s1157 = smul.u32 2, %s25
      $region52: #{convolution_forward.4} parent=47 // pred_fallthru
        _
      // Predicated region
      $region53: #{convolution_forward.4} parent=47 // pred_check
        %p1158 = pneg %p244
      $region54: #{convolution_forward.4} parent=47 // pred_check_branch
        %1160 = sbr.rel (%p1158) target = $region56
      $region55: #{convolution_forward.4} parent=47 // pred_region
        _
      $region56: #{convolution_forward.4} parent=47 // pred_fallthru
        _
    $region48: #{convolution_forward.4} parent=5 // pred_fallthru
      _
    %p1161 = scmp.le.s32.totalorder 2, %s15
    // Predicated region
    $region57: #{convolution_forward.4} parent=5 // pred_check
      %p1162 = pneg %p1161
    $region58: #{convolution_forward.4} parent=5 // pred_check_branch
      %1164 = sbr.rel (%p1162) target = $region60
    $region59: #{convolution_forward.4} parent=5 // pred_region
      %s1165 = ssub.s32 %s15, 2
      // Predicated region
      $region61: #{convolution_forward.4} parent=59 // pred_check
        %p1166 = pneg %p222
      $region62: #{convolution_forward.4} parent=59 // pred_check_branch
        %1168 = sbr.rel (%p1166) target = $region64
      $region63: #{convolution_forward.4} parent=59 // pred_region
        %s1169 = smul.u32 2, %s27
        %p1170 = scmp.lt.s32.totalorder %s26, 1
        %s1171 = scalar_select %p1170, %s26, 1
        %p1172 = scmp.lt.s32.totalorder %s1169, 1
        %s1173 = scalar_select %p1172, %s1169, 1
        %s1174 = smul.addr %s1173, 2
        %s1175 = smul.addr %s1171, 4
        %s1176 = sadd.s32 %s1174, %s1175
        %s1177 = smul.addr %s1176, 4
        %s1178 = scalar_lea.vmem %s7, %s1177
      $region64: #{convolution_forward.4} parent=59 // pred_fallthru
        _
      // Predicated region
      $region65: #{convolution_forward.4} parent=59 // pred_check
        %p1179 = pneg %p250
      $region66: #{convolution_forward.4} parent=59 // pred_check_branch
        %1181 = sbr.rel (%p1179) target = $region68
      $region67: #{convolution_forward.4} parent=59 // pred_region
        %p1182 = scmp.lt.s32.totalorder %s26, 1
        %s1183 = scalar_select %p1182, %s26, 1
        %p1184 = scmp.lt.s32.totalorder %s27, 0
        %s1185 = scalar_select %p1184, %s27, 0
        %s1186 = smul.addr %s1185, 2
        %s1187 = smul.addr %s1183, 2
        %s1188 = sadd.s32 %s1186, %s1187
        %s1189 = smul.addr %s1188, 8
        %s1190 = scalar_lea.vmem %s8, %s1189
      $region68: #{convolution_forward.4} parent=59 // pred_fallthru
        _
    $region60: #{convolution_forward.4} parent=5 // pred_fallthru
      _
  $region6: #{convolution_forward.4} parent=0 // loop_footer
    %s19 = sadd.s32 1, %s15
  $region7: #{convolution_forward.4} parent=0 // loop_footer_branch
    %14 = sbr.rel target = $region3
  $region8: #{convolution_forward.4} parent=0 // loop_exit
    _

// kernel: convolution_forward.5
$region0: #{convolution_forward.5}
  #allocation0 [shape = 'u32[]', space=smem, size = 0x4, offset = 0x4, fixed_abs, tag = 'smem constant byte address 0x4 - core index']
  #allocation1 [shape = 'u32[72,128]{1,0:T(1,128)}', space=vmem, size = 0x9000, scoped, tag = 'internal scratch']
  %s0 = inlined_call_operand.vmem [shape: bf16[32,144], index: 0, kind: input, shape index: {}]
  %s1 = inlined_call_operand.vmem [shape: f32[1,144], index: 1, kind: input, shape index: {}]
  %s2 = inlined_call_operand.vmem [shape: f32[1,144], index: 2, kind: input, shape index: {}]
  %s3 = inlined_call_operand.vmem [shape: f32[32,144], index: 3, kind: output, shape index: {}]
  %s4 = sld [smem:[#allocation0]]
  $region22: #{convolution_forward.5} parent=0
    _
  %s6 = ssub.s32 1, %s4
  %s7 = scalar_select 0, %s6, %s4
  // Predicated region
  $region2: #{convolution_forward.5} parent=0 // pred_check
    _
  $region3: #{convolution_forward.5} parent=0 // pred_check_branch
    %9 = sbr.rel (0) target = $region5
  $region4: #{convolution_forward.5} parent=0 // pred_region
    _
  $region5: #{convolution_forward.5} parent=0 // pred_fallthru
    _
  // Predicated region
  $region6: #{convolution_forward.5} parent=0 // pred_check
    _
  $region7: #{convolution_forward.5} parent=0 // pred_check_branch
    %11 = sbr.rel (0) target = $region9
  $region8: #{convolution_forward.5} parent=0 // pred_region
    _
  $region9: #{convolution_forward.5} parent=0 // pred_fallthru
    _
  // Predicated region
  $region10: #{convolution_forward.5} parent=0 // pred_check
    _
  $region11: #{convolution_forward.5} parent=0 // pred_check_branch
    %13 = sbr.rel (0) target = $region13
  $region12: #{convolution_forward.5} parent=0 // pred_region
    _
  $region13: #{convolution_forward.5} parent=0 // pred_fallthru
    _
  %v14 = vld [vmem:[%s0] sm:$0xff]
  %v15 = vld [vmem:[%s0 + $0x8] sm:$0xff]
  %v16 = vld [vmem:[%s0 + $0x10] sm:$0xff]
  %v17 = vld [vmem:[%s0 + $0x18] sm:$0xff]
  %v18 = vunpack.c.l.bf16 %v14
  %v19 = vunpack.c.h.bf16 %v14
  %v20 = vunpack.c.l.bf16 %v15
  %v21 = vunpack.c.h.bf16 %v15
  %v22 = vunpack.c.l.bf16 %v16
  %v23 = vunpack.c.h.bf16 %v16
  %v24 = vunpack.c.l.bf16 %v17
  %v25 = vunpack.c.h.bf16 %v17
  %v26 = vld [vmem:[%s1] sm:$0x3]
  %v28 = vperm.slane %v26, 0
  %v29 = vperm.slane %v26, 1
  %v32 = vmul.f32 %v18, %v28
  %v33 = vmul.f32 %v19, %v29
  %v34 = vmul.f32 %v20, %v28
  %v35 = vmul.f32 %v21, %v29
  %v36 = vmul.f32 %v22, %v28
  %v37 = vmul.f32 %v23, %v29
  %v38 = vmul.f32 %v24, %v28
  %v39 = vmul.f32 %v25, %v29
  %v40 = vld [vmem:[%s2] sm:$0x3]
  %v42 = vperm.slane %v40, 0
  %v43 = vperm.slane %v40, 1
  %v46 = vadd.f32 %v32, %v42
  %v47 = vadd.f32 %v33, %v43
  %v48 = vadd.f32 %v34, %v42
  %v49 = vadd.f32 %v35, %v43
  %v50 = vadd.f32 %v36, %v42
  %v51 = vadd.f32 %v37, %v43
  %v52 = vadd.f32 %v38, %v42
  %v53 = vadd.f32 %v39, %v43
  %v54 = vmax.f32 %v46, 0.0
  %v55 = vmax.f32 %v47, 0.0
  %v56 = vmax.f32 %v48, 0.0
  %v57 = vmax.f32 %v49, 0.0
  %v58 = vmax.f32 %v50, 0.0
  %v59 = vmax.f32 %v51, 0.0
  %v60 = vmax.f32 %v52, 0.0
  %v61 = vmax.f32 %v53, 0.0
  %62 = vst [vmem:[%s3] sm:$0xff] %v54
  %vm63 = vcmask 130048
  %64 = vst.msk [vmem:[%s3 + $0x8] sm:$0xff] %vm63, %v55
  %65 = vst [vmem:[%s3 + $0x10] sm:$0xff] %v56
  %66 = vst.msk [vmem:[%s3 + $0x18] sm:$0xff] %vm63, %v57
  %67 = vst [vmem:[%s3 + $0x20] sm:$0xff] %v58
  %68 = vst.msk [vmem:[%s3 + $0x28] sm:$0xff] %vm63, %v59
  %69 = vst [vmem:[%s3 + $0x30] sm:$0xff] %v60
  %70 = vst.msk [vmem:[%s3 + $0x38] sm:$0xff] %vm63, %v61
  // Predicated region
  $region14: #{convolution_forward.5} parent=0 // pred_check
    _
  $region15: #{convolution_forward.5} parent=0 // pred_check_branch
    %72 = sbr.rel (0) target = $region17
  $region16: #{convolution_forward.5} parent=0 // pred_region
    _
  $region17: #{convolution_forward.5} parent=0 // pred_fallthru
    _
  // Predicated region
  $region18: #{convolution_forward.5} parent=0 // pred_check
    _
  $region19: #{convolution_forward.5} parent=0 // pred_check_branch
    %74 = sbr.rel (0) target = $region21
  $region20: #{convolution_forward.5} parent=0 // pred_region
    _
  $region21: #{convolution_forward.5} parent=0 // pred_fallthru
    _

</llo_original>
